<compile_context>
chip_gen: v5e
topology: v5e:2x2
jax: 0.10.0
libtpu: 0.0.40
codegen_flags: <defaults>
</compile_context>

<pallas_src>
import functools
import math

import jax
import jax.numpy as jnp
from jax.experimental import pallas as pl
from jax.experimental.pallas import tpu as pltpu  # noqa: F401  (TPU backend)


# ----------------------------------------------------------------------------
# Synthetic BERT config (deterministic init)
# ----------------------------------------------------------------------------
VOCAB = 50
TYPE_VOCAB = 2
MAX_POS = 16
HIDDEN = 32
N_HEADS = 2
HEAD_DIM = HIDDEN // N_HEADS
INTERMEDIATE = 64
N_LAYERS = 2
LN_EPS = 1e-12          # BERT LayerNorm eps
NEG_BIG = -1e9          # cross-batch entries of the block-diagonal bias


# ----------------------------------------------------------------------------
# Fused Pallas kernel: embeddings + embedding LN + N_LAYERS encoder layers
# ----------------------------------------------------------------------------
def _layernorm(x, g, b):
    mean = jnp.mean(x, axis=-1, keepdims=True)
    var = jnp.mean((x - mean) ** 2, axis=-1, keepdims=True)
    return (x - mean) * jax.lax.rsqrt(var + LN_EPS) * g + b


def _fused_bert_kernel(word_ids_ref, type_ids_ref, pos_ids_ref,
                       bid_row_ref, bid_col_ref, mask_ref,
                       word_emb_ref, pos_emb_ref, type_emb_ref,
                       emb_g_ref, emb_b_ref,
                       wqkv_ref, bqkv_ref,
                       wo_ref, bo_ref,
                       ln1_g_ref, ln1_b_ref,
                       wi_ref, bi_ref,
                       wp_ref, bp_ref,
                       ln2_g_ref, ln2_b_ref,
                       out_ref, *, bs):
    f32 = jnp.float32
    bf16 = jnp.bfloat16

    # ---- Embedding lookup via one-hot MXU matmuls (exact f32 row gathers) ---
    word_oh = (jax.lax.broadcasted_iota(jnp.int32, (bs, VOCAB), 1)
               == word_ids_ref[...]).astype(f32)
    emb = jnp.dot(word_oh, word_emb_ref[...], preferred_element_type=f32)
    pos_oh = (jax.lax.broadcasted_iota(jnp.int32, (bs, MAX_POS), 1)
              == pos_ids_ref[...]).astype(f32)
    emb = emb + jnp.dot(pos_oh, pos_emb_ref[...], preferred_element_type=f32)
    # Token-type embedding (TYPE_VOCAB == 2): exact 0/1 lerp between the rows.
    t_sel = type_ids_ref[...].astype(f32)                          # (bs, 1)
    emb = emb + (type_emb_ref[0:1, :]
                 + t_sel * (type_emb_ref[1:2, :] - type_emb_ref[0:1, :]))

    x = _layernorm(emb, emb_g_ref[...], emb_b_ref[...])

    # ---- Block-diagonal additive attention bias (built once, reused) -------
    # Within-batch keys get the BERT (1 - mask) * -10000 padding bias; the
    # cross-batch entries get -1e9 so their probabilities underflow to 0.
    key_bias = (1.0 - mask_ref[...]) * -10000.0                    # (1, bs)
    same = (bid_row_ref[...] == bid_col_ref[...]).astype(f32)      # (bs, bs)
    attn_bias = same * key_bias + (1.0 - same) * NEG_BIG           # (bs, bs)

    for layer in range(N_LAYERS):
        # Fused QKV projection (1/sqrt(Dh) folded into Q at pack time).
        qkv = (jnp.dot(x.astype(bf16), wqkv_ref[layer],
                       preferred_element_type=f32) + bqkv_ref[layer])
        qkv_b = qkv.astype(bf16)

        # Whole-batch attention per head; context kept in vregs (no scratch).
        ctx_heads = []
        for h in range(N_HEADS):
            c0 = h * HEAD_DIM
            qh = qkv_b[:, c0:c0 + HEAD_DIM]                        # (bs, Dh)
            kh = qkv_b[:, HIDDEN + c0:HIDDEN + c0 + HEAD_DIM]
            vh = qkv_b[:, 2 * HIDDEN + c0:2 * HIDDEN + c0 + HEAD_DIM]
            # Contract the trailing dim directly — no kh.T materialized.
            s = jax.lax.dot_general(qh, kh, (((1,), (1,)), ((), ())),
                                    preferred_element_type=f32)    # (bs, bs)
            s = s + attn_bias
            s = s - jnp.max(s, axis=-1, keepdims=True)
            p = jnp.exp(s)
            p = p * pl.reciprocal(jnp.sum(p, axis=-1, keepdims=True),
                                  approx=True)
            ctx_heads.append(jnp.dot(p.astype(bf16), vh,
                                     preferred_element_type=f32))
        ctx = jnp.concatenate(ctx_heads, axis=-1)                  # (bs, H)

        attn_out = (jnp.dot(ctx.astype(bf16), wo_ref[layer],
                            preferred_element_type=f32) + bo_ref[layer])
        x = _layernorm(attn_out + x, ln1_g_ref[layer], ln1_b_ref[layer])

        # Feed-forward.
        h1 = (jnp.dot(x.astype(bf16), wi_ref[layer],
                      preferred_element_type=f32) + bi_ref[layer])
        # TODO(synk): HuggingFace BertModel uses exact (erf) GELU; tanh approx here.
        h1 = jax.nn.gelu(h1, approximate=True)
        h2 = (jnp.dot(h1.astype(bf16), wp_ref[layer],
                      preferred_element_type=f32) + bp_ref[layer])
        x = _layernorm(h2 + x, ln2_g_ref[layer], ln2_b_ref[layer])

    out_ref[...] = x


# ----------------------------------------------------------------------------
# LanguageEmbeddingLayer.forward equivalent
# ----------------------------------------------------------------------------
def language_embedding_forward(packed, sentences, bert_sent, bert_sent_type,
                               bert_sent_mask):
    """Mirrors LanguageEmbeddingLayer.forward: returns the last hidden state."""
    del sentences  # unused by the PyTorch forward as well
    B, S = bert_sent.shape
    BS = B * S

    # Zero-compute reshapes of the runtime inputs; everything else below is a
    # compile-time constant folded by XLA (no gathers/elementwise dispatches).
    word_ids = bert_sent.reshape(BS, 1).astype(jnp.int32)
    type_ids = bert_sent_type.reshape(BS, 1).astype(jnp.int32)
    mask_row = bert_sent_mask.reshape(1, BS).astype(jnp.float32)
    pos_ids = jnp.tile(jnp.arange(S, dtype=jnp.int32), B).reshape(BS, 1)
    bid_row = jnp.repeat(jnp.arange(B, dtype=jnp.int32), S).reshape(BS, 1)
    bid_col = bid_row.reshape(1, BS)

    kernel = functools.partial(_fused_bert_kernel, bs=BS)
    out = pl.pallas_call(
        kernel,
        out_shape=jax.ShapeDtypeStruct((BS, HIDDEN), jnp.float32),
    )(word_ids, type_ids, pos_ids, bid_row, bid_col, mask_row,
      packed["word_emb"], packed["pos_emb"], packed["type_emb"],
      packed["emb_ln_g"], packed["emb_ln_b"],
      packed["wqkv"], packed["bqkv"],
      packed["wo"], packed["bo"],
      packed["ln1_g"], packed["ln1_b"],
      packed["wi"], packed["bi"],
      packed["wp"], packed["bp"],
      packed["ln2_g"], packed["ln2_b"])
    return out.reshape(B, S, HIDDEN)  # == bert_output[0] (last hidden state)


# ----------------------------------------------------------------------------
# Synthetic parameters
# ----------------------------------------------------------------------------
def init_params(key):
    def nrm(k, shape):
        return 0.02 * jax.random.normal(k, shape, dtype=jnp.float32)

    keys = jax.random.split(key, 4 + N_LAYERS)
    params = {
        "word_emb": nrm(keys[0], (VOCAB, HIDDEN)),
        "pos_emb": nrm(keys[1], (MAX_POS, HIDDEN)),
        "type_emb": nrm(keys[2], (TYPE_VOCAB, HIDDEN)),
        "emb_ln_g": jnp.ones((HIDDEN,), jnp.float32),
        "emb_ln_b": jnp.zeros((HIDDEN,), jnp.float32),
        "layers": [],
    }
    for l in range(N_LAYERS):
        lk = jax.random.split(keys[4 + l], 6)
        params["layers"].append({
            "wq": nrm(lk[0], (HIDDEN, HIDDEN)), "bq": jnp.zeros((HIDDEN,), jnp.float32),
            "wk": nrm(lk[1], (HIDDEN, HIDDEN)), "bk": jnp.zeros((HIDDEN,), jnp.float32),
            "wv": nrm(lk[2], (HIDDEN, HIDDEN)), "bv": jnp.zeros((HIDDEN,), jnp.float32),
            "wo": nrm(lk[3], (HIDDEN, HIDDEN)), "bo": jnp.zeros((HIDDEN,), jnp.float32),
            "ln1_g": jnp.ones((HIDDEN,), jnp.float32), "ln1_b": jnp.zeros((HIDDEN,), jnp.float32),
            "wi": nrm(lk[4], (HIDDEN, INTERMEDIATE)), "bi": jnp.zeros((INTERMEDIATE,), jnp.float32),
            "wp": nrm(lk[5], (INTERMEDIATE, HIDDEN)), "bp": jnp.zeros((HIDDEN,), jnp.float32),
            "ln2_g": jnp.ones((HIDDEN,), jnp.float32), "ln2_b": jnp.zeros((HIDDEN,), jnp.float32),
        })
    return params


def pack_params(params):
    """Concatenate QKV (1/sqrt(Dh) folded into the Q slice), stack per-layer
    tensors on a leading layer axis, reshape biases / LN params to (L, 1, N).
    Matmul weights are stored in bf16 (MXU-native); biases/LN/tables stay f32."""
    scale = 1.0 / math.sqrt(HEAD_DIM)

    def stack(fn):
        return jnp.stack([fn(lp) for lp in params["layers"]], axis=0)

    return {
        "word_emb": params["word_emb"],
        "pos_emb": params["pos_emb"],
        "type_emb": params["type_emb"],
        "emb_ln_g": params["emb_ln_g"][None, :],
        "emb_ln_b": params["emb_ln_b"][None, :],
        "wqkv": stack(lambda lp: jnp.concatenate(
            [lp["wq"] * scale, lp["wk"], lp["wv"]], axis=1)).astype(jnp.bfloat16),
        "bqkv": stack(lambda lp: jnp.concatenate(
            [lp["bq"] * scale, lp["bk"], lp["bv"]])[None, :]),
        "wo": stack(lambda lp: lp["wo"]).astype(jnp.bfloat16),
        "bo": stack(lambda lp: lp["bo"][None, :]),
        "ln1_g": stack(lambda lp: lp["ln1_g"][None, :]),
        "ln1_b": stack(lambda lp: lp["ln1_b"][None, :]),
        "wi": stack(lambda lp: lp["wi"]).astype(jnp.bfloat16),
        "bi": stack(lambda lp: lp["bi"][None, :]),
        "wp": stack(lambda lp: lp["wp"]).astype(jnp.bfloat16),
        "bp": stack(lambda lp: lp["bp"][None, :]),
        "ln2_g": stack(lambda lp: lp["ln2_g"][None, :]),
        "ln2_b": stack(lambda lp: lp["ln2_b"][None, :]),
    }


# ----------------------------------------------------------------------------
# Pure-JAX reference (same packed weights) for a correctness check
# ----------------------------------------------------------------------------
def reference_forward(packed, bert_sent, bert_sent_type, bert_sent_mask):
    B, S = bert_sent.shape

    def ln(x, g, b):
        m = jnp.mean(x, axis=-1, keepdims=True)
        v = jnp.mean((x - m) ** 2, axis=-1, keepdims=True)
        return (x - m) / jnp.sqrt(v + LN_EPS) * g + b

    emb = (packed["word_emb"][bert_sent]
           + packed["pos_emb"][jnp.arange(S)][None]
           + packed["type_emb"][bert_sent_type])
    x = ln(emb.reshape(B * S, HIDDEN), packed["emb_ln_g"], packed["emb_ln_b"])
    bias = (1.0 - bert_sent_mask.astype(jnp.float32)) * -10000.0   # (B, S)

    for l in range(N_LAYERS):
        qkv = x @ packed["wqkv"][l].astype(jnp.float32) + packed["bqkv"][l]
        q, k, v = (qkv[:, :HIDDEN], qkv[:, HIDDEN:2 * HIDDEN],
                   qkv[:, 2 * HIDDEN:])

        def heads(t):
            return t.reshape(B, S, N_HEADS, HEAD_DIM).transpose(0, 2, 1, 3)

        qh, kh, vh = heads(q), heads(k), heads(v)
        s = jnp.einsum("bhqd,bhkd->bhqk", qh, kh) + bias[:, None, None, :]
        p = jax.nn.softmax(s, axis=-1)
        ctx = (jnp.einsum("bhqk,bhkd->bhqd", p, vh)
               .transpose(0, 2, 1, 3).reshape(B * S, HIDDEN))
        x = ln(ctx @ packed["wo"][l].astype(jnp.float32) + packed["bo"][l] + x,
               packed["ln1_g"][l], packed["ln1_b"][l])
        h1 = jax.nn.gelu(x @ packed["wi"][l].astype(jnp.float32)
                         + packed["bi"][l], approximate=True)
        x = ln(h1 @ packed["wp"][l].astype(jnp.float32) + packed["bp"][l] + x,
               packed["ln2_g"][l], packed["ln2_b"][l])
    return x.reshape(B, S, HIDDEN)


# ----------------------------------------------------------------------------
# Driver
# ----------------------------------------------------------------------------
if __name__ == "__main__":
    key = jax.random.PRNGKey(0)
    pkey, ikey = jax.random.split(key)
    packed = pack_params(init_params(pkey))

    B, S = 2, 8
    bert_sent = jax.random.randint(ikey, (B, S), 0, VOCAB, dtype=jnp.int32)
    bert_sent_type = jnp.concatenate(
        [jnp.zeros((B, S // 2), jnp.int32), jnp.ones((B, S // 2), jnp.int32)],
        axis=1)
    # second sequence has 2 padding tokens at the end
    bert_sent_mask = jnp.array(
        [[1, 1, 1, 1, 1, 1, 1, 1],
         [1, 1, 1, 1, 1, 1, 0, 0]], dtype=jnp.float32)
    sentences = None  # unused by forward()

    fwd = jax.jit(language_embedding_forward)
    out = jax.block_until_ready(
        fwd(packed, sentences, bert_sent, bert_sent_type, bert_sent_mask))

    assert out.shape == (B, S, HIDDEN)
    assert bool(jnp.all(jnp.isfinite(out)))

    with jax.default_matmul_precision("highest"):
        ref = reference_forward(packed, bert_sent, bert_sent_type,
                                bert_sent_mask)
    max_err = float(jnp.max(jnp.abs(out - ref)))
    assert max_err < 1e-2, f"max abs error vs pure-JAX reference: {max_err}"

    print("KERNEL_OK")
</pallas_src>

<mosaic_0001>
module attributes {stable_mosaic.version = 11 : i64} {
  func.func @_fused_bert_kernel(%arg0: memref<16x1xi32, #tpu.memory_space<vmem>>, %arg1: memref<16x1xi32, #tpu.memory_space<vmem>>, %arg2: memref<16x1xi32, #tpu.memory_space<vmem>>, %arg3: memref<16x1xi32, #tpu.memory_space<vmem>>, %arg4: memref<1x16xi32, #tpu.memory_space<vmem>>, %arg5: memref<1x16xf32, #tpu.memory_space<vmem>>, %arg6: memref<50x32xf32, #tpu.memory_space<vmem>>, %arg7: memref<16x32xf32, #tpu.memory_space<vmem>>, %arg8: memref<2x32xf32, #tpu.memory_space<vmem>>, %arg9: memref<1x32xf32, #tpu.memory_space<vmem>>, %arg10: memref<1x32xf32, #tpu.memory_space<vmem>>, %arg11: memref<2x32x96xbf16, #tpu.memory_space<vmem>>, %arg12: memref<2x1x96xf32, #tpu.memory_space<vmem>>, %arg13: memref<2x32x32xbf16, #tpu.memory_space<vmem>>, %arg14: memref<2x1x32xf32, #tpu.memory_space<vmem>>, %arg15: memref<2x1x32xf32, #tpu.memory_space<vmem>>, %arg16: memref<2x1x32xf32, #tpu.memory_space<vmem>>, %arg17: memref<2x32x64xbf16, #tpu.memory_space<vmem>>, %arg18: memref<2x1x64xf32, #tpu.memory_space<vmem>>, %arg19: memref<2x64x32xbf16, #tpu.memory_space<vmem>>, %arg20: memref<2x1x32xf32, #tpu.memory_space<vmem>>, %arg21: memref<2x1x32xf32, #tpu.memory_space<vmem>>, %arg22: memref<2x1x32xf32, #tpu.memory_space<vmem>>, %arg23: memref<16x32xf32, #tpu.memory_space<vmem>>) attributes {dimension_semantics = [], scalar_prefetch = 0 : i64, scratch_operands = 0 : i64, tpu.core_type = #tpu.core_type<tc>} {
    %0 = tpu.iota {dimensions = array<i32: 1>} : vector<16x50xi32>
    %c0 = arith.constant 0 : index
    %c0_0 = arith.constant 0 : index
    %1 = vector.load %arg0[%c0, %c0_0] : memref<16x1xi32, #tpu.memory_space<vmem>>, vector<16x1xi32>
    %2 = vector.broadcast %1 : vector<16x1xi32> to vector<16x50xi32>
    %3 = arith.cmpi eq, %0, %2 : vector<16x50xi32>
    %4 = arith.extui %3 : vector<16x50xi1> to vector<16x50xi32>
    %5 = arith.sitofp %4 : vector<16x50xi32> to vector<16x50xf32>
    %c0_1 = arith.constant 0 : index
    %c0_2 = arith.constant 0 : index
    %6 = vector.load %arg6[%c0_1, %c0_2] : memref<50x32xf32, #tpu.memory_space<vmem>>, vector<50x32xf32>
    %cst = arith.constant dense<0.000000e+00> : vector<16x32xf32>
    %7 = tpu.matmul %5, %6, %cst {dimension_numbers = #tpu.dot_dimension_numbers<[1], [0], [0], [1], [0, 0, 1, 1], [], []>} : vector<16x50xf32>, vector<50x32xf32>, vector<16x32xf32> -> vector<16x32xf32>
    %8 = tpu.iota {dimensions = array<i32: 1>} : vector<16x16xi32>
    %c0_3 = arith.constant 0 : index
    %c0_4 = arith.constant 0 : index
    %9 = vector.load %arg2[%c0_3, %c0_4] : memref<16x1xi32, #tpu.memory_space<vmem>>, vector<16x1xi32>
    %10 = vector.broadcast %9 : vector<16x1xi32> to vector<16x16xi32>
    %11 = arith.cmpi eq, %8, %10 : vector<16x16xi32>
    %12 = arith.extui %11 : vector<16x16xi1> to vector<16x16xi32>
    %13 = arith.sitofp %12 : vector<16x16xi32> to vector<16x16xf32>
    %c0_5 = arith.constant 0 : index
    %c0_6 = arith.constant 0 : index
    %14 = vector.load %arg7[%c0_5, %c0_6] : memref<16x32xf32, #tpu.memory_space<vmem>>, vector<16x32xf32>
    %cst_7 = arith.constant dense<0.000000e+00> : vector<16x32xf32>
    %15 = tpu.matmul %13, %14, %cst_7 {dimension_numbers = #tpu.dot_dimension_numbers<[1], [0], [0], [1], [0, 0, 1, 1], [], []>} : vector<16x16xf32>, vector<16x32xf32>, vector<16x32xf32> -> vector<16x32xf32>
    %16 = arith.addf %7, %15 : vector<16x32xf32>
    %c0_8 = arith.constant 0 : index
    %c0_9 = arith.constant 0 : index
    %17 = vector.load %arg1[%c0_8, %c0_9] : memref<16x1xi32, #tpu.memory_space<vmem>>, vector<16x1xi32>
    %18 = arith.sitofp %17 : vector<16x1xi32> to vector<16x1xf32>
    %c0_10 = arith.constant 0 : index
    %c0_11 = arith.constant 0 : index
    %19 = vector.load %arg8[%c0_10, %c0_11] : memref<2x32xf32, #tpu.memory_space<vmem>>, vector<1x32xf32>
    %c1 = arith.constant 1 : index
    %c0_12 = arith.constant 0 : index
    %20 = vector.load %arg8[%c1, %c0_12] : memref<2x32xf32, #tpu.memory_space<vmem>>, vector<1x32xf32>
    %c0_13 = arith.constant 0 : index
    %c0_14 = arith.constant 0 : index
    %21 = vector.load %arg8[%c0_13, %c0_14] : memref<2x32xf32, #tpu.memory_space<vmem>>, vector<1x32xf32>
    %22 = arith.subf %20, %21 : vector<1x32xf32>
    %23 = vector.broadcast %18 : vector<16x1xf32> to vector<16x32xf32>
    %24 = vector.broadcast %22 : vector<1x32xf32> to vector<16x32xf32>
    %25 = arith.mulf %23, %24 : vector<16x32xf32>
    %26 = vector.broadcast %19 : vector<1x32xf32> to vector<16x32xf32>
    %27 = arith.addf %26, %25 : vector<16x32xf32>
    %28 = arith.addf %16, %27 : vector<16x32xf32>
    %c0_15 = arith.constant 0 : index
    %c0_16 = arith.constant 0 : index
    %29 = vector.load %arg9[%c0_15, %c0_16] : memref<1x32xf32, #tpu.memory_space<vmem>>, vector<1x32xf32>
    %c0_17 = arith.constant 0 : index
    %c0_18 = arith.constant 0 : index
    %30 = vector.load %arg10[%c0_17, %c0_18] : memref<1x32xf32, #tpu.memory_space<vmem>>, vector<1x32xf32>
    %cst_19 = arith.constant dense<0.000000e+00> : vector<16xf32>
    %31 = vector.multi_reduction <add>, %28, %cst_19 [1] : vector<16x32xf32> to vector<16xf32>
    %32 = vector.shape_cast %31 : vector<16xf32> to vector<16x1xf32>
    %cst_20 = arith.constant 3.200000e+01 : f32
    %33 = vector.broadcast %cst_20 : f32 to vector<16x1xf32>
    %34 = arith.divf %32, %33 : vector<16x1xf32>
    %35 = vector.broadcast %34 : vector<16x1xf32> to vector<16x32xf32>
    %36 = arith.subf %28, %35 : vector<16x32xf32>
    %37 = arith.mulf %36, %36 : vector<16x32xf32>
    %cst_21 = arith.constant dense<0.000000e+00> : vector<16xf32>
    %38 = vector.multi_reduction <add>, %37, %cst_21 [1] : vector<16x32xf32> to vector<16xf32>
    %39 = vector.shape_cast %38 : vector<16xf32> to vector<16x1xf32>
    %cst_22 = arith.constant 3.200000e+01 : f32
    %40 = vector.broadcast %cst_22 : f32 to vector<16x1xf32>
    %41 = arith.divf %39, %40 : vector<16x1xf32>
    %42 = vector.broadcast %34 : vector<16x1xf32> to vector<16x32xf32>
    %43 = arith.subf %28, %42 : vector<16x32xf32>
    %cst_23 = arith.constant 9.99999996E-13 : f32
    %44 = vector.broadcast %cst_23 : f32 to vector<16x1xf32>
    %45 = arith.addf %41, %44 : vector<16x1xf32>
    %46 = math.rsqrt %45 : vector<16x1xf32>
    %47 = vector.broadcast %46 : vector<16x1xf32> to vector<16x32xf32>
    %48 = arith.mulf %43, %47 : vector<16x32xf32>
    %49 = vector.broadcast %29 : vector<1x32xf32> to vector<16x32xf32>
    %50 = arith.mulf %48, %49 : vector<16x32xf32>
    %51 = vector.broadcast %30 : vector<1x32xf32> to vector<16x32xf32>
    %52 = arith.addf %50, %51 : vector<16x32xf32>
    %c0_24 = arith.constant 0 : index
    %c0_25 = arith.constant 0 : index
    %53 = vector.load %arg5[%c0_24, %c0_25] : memref<1x16xf32, #tpu.memory_space<vmem>>, vector<1x16xf32>
    %cst_26 = arith.constant 1.000000e+00 : f32
    %54 = vector.broadcast %cst_26 : f32 to vector<1x16xf32>
    %55 = arith.subf %54, %53 : vector<1x16xf32>
    %cst_27 = arith.constant -1.000000e+04 : f32
    %56 = vector.broadcast %cst_27 : f32 to vector<1x16xf32>
    %57 = arith.mulf %55, %56 : vector<1x16xf32>
    %c0_28 = arith.constant 0 : index
    %c0_29 = arith.constant 0 : index
    %58 = vector.load %arg3[%c0_28, %c0_29] : memref<16x1xi32, #tpu.memory_space<vmem>>, vector<16x1xi32>
    %c0_30 = arith.constant 0 : index
    %c0_31 = arith.constant 0 : index
    %59 = vector.load %arg4[%c0_30, %c0_31] : memref<1x16xi32, #tpu.memory_space<vmem>>, vector<1x16xi32>
    %60 = vector.broadcast %58 : vector<16x1xi32> to vector<16x16xi32>
    %61 = vector.broadcast %59 : vector<1x16xi32> to vector<16x16xi32>
    %62 = arith.cmpi eq, %60, %61 : vector<16x16xi32>
    %63 = arith.extui %62 : vector<16x16xi1> to vector<16x16xi32>
    %64 = arith.sitofp %63 : vector<16x16xi32> to vector<16x16xf32>
    %65 = vector.broadcast %57 : vector<1x16xf32> to vector<16x16xf32>
    %66 = arith.mulf %64, %65 : vector<16x16xf32>
    %cst_32 = arith.constant 1.000000e+00 : f32
    %67 = vector.broadcast %cst_32 : f32 to vector<16x16xf32>
    %68 = arith.subf %67, %64 : vector<16x16xf32>
    %cst_33 = arith.constant -1.000000e+09 : f32
    %69 = vector.broadcast %cst_33 : f32 to vector<16x16xf32>
    %70 = arith.mulf %68, %69 : vector<16x16xf32>
    %71 = arith.addf %66, %70 : vector<16x16xf32>
    %72 = arith.truncf %52 : vector<16x32xf32> to vector<16x32xbf16>
    %c0_34 = arith.constant 0 : index
    %c0_35 = arith.constant 0 : index
    %c0_36 = arith.constant 0 : index
    %73 = vector.load %arg11[%c0_34, %c0_35, %c0_36] : memref<2x32x96xbf16, #tpu.memory_space<vmem>>, vector<1x32x96xbf16>
    %74 = vector.shape_cast %73 : vector<1x32x96xbf16> to vector<32x96xbf16>
    %cst_37 = arith.constant dense<0.000000e+00> : vector<16x96xf32>
    %75 = tpu.matmul %72, %74, %cst_37 {dimension_numbers = #tpu.dot_dimension_numbers<[1], [0], [0], [1], [0, 0, 1, 1], [], []>} : vector<16x32xbf16>, vector<32x96xbf16>, vector<16x96xf32> -> vector<16x96xf32>
    %c0_38 = arith.constant 0 : index
    %c0_39 = arith.constant 0 : index
    %c0_40 = arith.constant 0 : index
    %76 = vector.load %arg12[%c0_38, %c0_39, %c0_40] : memref<2x1x96xf32, #tpu.memory_space<vmem>>, vector<1x1x96xf32>
    %77 = vector.shape_cast %76 : vector<1x1x96xf32> to vector<1x96xf32>
    %78 = vector.broadcast %77 : vector<1x96xf32> to vector<16x96xf32>
    %79 = arith.addf %75, %78 : vector<16x96xf32>
    %80 = arith.truncf %79 : vector<16x96xf32> to vector<16x96xbf16>
    %81 = vector.extract_strided_slice %80 {offsets = [0, 0], sizes = [16, 16], strides = [1, 1]} : vector<16x96xbf16> to vector<16x16xbf16>
    %82 = vector.extract_strided_slice %80 {offsets = [0, 32], sizes = [16, 16], strides = [1, 1]} : vector<16x96xbf16> to vector<16x16xbf16>
    %83 = vector.extract_strided_slice %80 {offsets = [0, 64], sizes = [16, 16], strides = [1, 1]} : vector<16x96xbf16> to vector<16x16xbf16>
    %cst_41 = arith.constant dense<0.000000e+00> : vector<16x16xf32>
    %84 = tpu.matmul %81, %82, %cst_41 {dimension_numbers = #tpu.dot_dimension_numbers<[1], [1], [0], [0], [0, 0, 1, 0], [], []>} : vector<16x16xbf16>, vector<16x16xbf16>, vector<16x16xf32> -> vector<16x16xf32>
    %85 = arith.addf %84, %71 : vector<16x16xf32>
    %cst_42 = arith.constant dense<0xFF800000> : vector<16xf32>
    %86 = vector.multi_reduction <maximumf>, %85, %cst_42 [1] : vector<16x16xf32> to vector<16xf32>
    %87 = vector.shape_cast %86 : vector<16xf32> to vector<16x1xf32>
    %88 = vector.broadcast %87 : vector<16x1xf32> to vector<16x16xf32>
    %89 = arith.subf %85, %88 : vector<16x16xf32>
    %90 = math.exp %89 : vector<16x16xf32>
    %cst_43 = arith.constant dense<0.000000e+00> : vector<16xf32>
    %91 = vector.multi_reduction <add>, %90, %cst_43 [1] : vector<16x16xf32> to vector<16xf32>
    %92 = vector.shape_cast %91 : vector<16xf32> to vector<16x1xf32>
    %93 = tpu.reciprocal %92 {approx = true} : vector<16x1xf32> -> vector<16x1xf32>
    %94 = vector.broadcast %93 : vector<16x1xf32> to vector<16x16xf32>
    %95 = arith.mulf %90, %94 : vector<16x16xf32>
    %96 = arith.truncf %95 : vector<16x16xf32> to vector<16x16xbf16>
    %cst_44 = arith.constant dense<0.000000e+00> : vector<16x16xf32>
    %97 = tpu.matmul %96, %83, %cst_44 {dimension_numbers = #tpu.dot_dimension_numbers<[1], [0], [0], [1], [0, 0, 1, 1], [], []>} : vector<16x16xbf16>, vector<16x16xbf16>, vector<16x16xf32> -> vector<16x16xf32>
    %98 = vector.extract_strided_slice %80 {offsets = [0, 16], sizes = [16, 16], strides = [1, 1]} : vector<16x96xbf16> to vector<16x16xbf16>
    %99 = vector.extract_strided_slice %80 {offsets = [0, 48], sizes = [16, 16], strides = [1, 1]} : vector<16x96xbf16> to vector<16x16xbf16>
    %100 = vector.extract_strided_slice %80 {offsets = [0, 80], sizes = [16, 16], strides = [1, 1]} : vector<16x96xbf16> to vector<16x16xbf16>
    %cst_45 = arith.constant dense<0.000000e+00> : vector<16x16xf32>
    %101 = tpu.matmul %98, %99, %cst_45 {dimension_numbers = #tpu.dot_dimension_numbers<[1], [1], [0], [0], [0, 0, 1, 0], [], []>} : vector<16x16xbf16>, vector<16x16xbf16>, vector<16x16xf32> -> vector<16x16xf32>
    %102 = arith.addf %101, %71 : vector<16x16xf32>
    %cst_46 = arith.constant dense<0xFF800000> : vector<16xf32>
    %103 = vector.multi_reduction <maximumf>, %102, %cst_46 [1] : vector<16x16xf32> to vector<16xf32>
    %104 = vector.shape_cast %103 : vector<16xf32> to vector<16x1xf32>
    %105 = vector.broadcast %104 : vector<16x1xf32> to vector<16x16xf32>
    %106 = arith.subf %102, %105 : vector<16x16xf32>
    %107 = math.exp %106 : vector<16x16xf32>
    %cst_47 = arith.constant dense<0.000000e+00> : vector<16xf32>
    %108 = vector.multi_reduction <add>, %107, %cst_47 [1] : vector<16x16xf32> to vector<16xf32>
    %109 = vector.shape_cast %108 : vector<16xf32> to vector<16x1xf32>
    %110 = tpu.reciprocal %109 {approx = true} : vector<16x1xf32> -> vector<16x1xf32>
    %111 = vector.broadcast %110 : vector<16x1xf32> to vector<16x16xf32>
    %112 = arith.mulf %107, %111 : vector<16x16xf32>
    %113 = arith.truncf %112 : vector<16x16xf32> to vector<16x16xbf16>
    %cst_48 = arith.constant dense<0.000000e+00> : vector<16x16xf32>
    %114 = tpu.matmul %113, %100, %cst_48 {dimension_numbers = #tpu.dot_dimension_numbers<[1], [0], [0], [1], [0, 0, 1, 1], [], []>} : vector<16x16xbf16>, vector<16x16xbf16>, vector<16x16xf32> -> vector<16x16xf32>
    %115 = tpu.concatenate %97, %114 in 1 : vector<16x16xf32>, vector<16x16xf32> -> vector<16x32xf32>
    %116 = arith.truncf %115 : vector<16x32xf32> to vector<16x32xbf16>
    %c0_49 = arith.constant 0 : index
    %c0_50 = arith.constant 0 : index
    %c0_51 = arith.constant 0 : index
    %117 = vector.load %arg13[%c0_49, %c0_50, %c0_51] : memref<2x32x32xbf16, #tpu.memory_space<vmem>>, vector<1x32x32xbf16>
    %118 = vector.shape_cast %117 : vector<1x32x32xbf16> to vector<32x32xbf16>
    %cst_52 = arith.constant dense<0.000000e+00> : vector<16x32xf32>
    %119 = tpu.matmul %116, %118, %cst_52 {dimension_numbers = #tpu.dot_dimension_numbers<[1], [0], [0], [1], [0, 0, 1, 1], [], []>} : vector<16x32xbf16>, vector<32x32xbf16>, vector<16x32xf32> -> vector<16x32xf32>
    %c0_53 = arith.constant 0 : index
    %c0_54 = arith.constant 0 : index
    %c0_55 = arith.constant 0 : index
    %120 = vector.load %arg14[%c0_53, %c0_54, %c0_55] : memref<2x1x32xf32, #tpu.memory_space<vmem>>, vector<1x1x32xf32>
    %121 = vector.shape_cast %120 : vector<1x1x32xf32> to vector<1x32xf32>
    %122 = vector.broadcast %121 : vector<1x32xf32> to vector<16x32xf32>
    %123 = arith.addf %119, %122 : vector<16x32xf32>
    %124 = arith.addf %123, %52 : vector<16x32xf32>
    %c0_56 = arith.constant 0 : index
    %c0_57 = arith.constant 0 : index
    %c0_58 = arith.constant 0 : index
    %125 = vector.load %arg15[%c0_56, %c0_57, %c0_58] : memref<2x1x32xf32, #tpu.memory_space<vmem>>, vector<1x1x32xf32>
    %126 = vector.shape_cast %125 : vector<1x1x32xf32> to vector<1x32xf32>
    %c0_59 = arith.constant 0 : index
    %c0_60 = arith.constant 0 : index
    %c0_61 = arith.constant 0 : index
    %127 = vector.load %arg16[%c0_59, %c0_60, %c0_61] : memref<2x1x32xf32, #tpu.memory_space<vmem>>, vector<1x1x32xf32>
    %128 = vector.shape_cast %127 : vector<1x1x32xf32> to vector<1x32xf32>
    %cst_62 = arith.constant dense<0.000000e+00> : vector<16xf32>
    %129 = vector.multi_reduction <add>, %124, %cst_62 [1] : vector<16x32xf32> to vector<16xf32>
    %130 = vector.shape_cast %129 : vector<16xf32> to vector<16x1xf32>
    %cst_63 = arith.constant 3.200000e+01 : f32
    %131 = vector.broadcast %cst_63 : f32 to vector<16x1xf32>
    %132 = arith.divf %130, %131 : vector<16x1xf32>
    %133 = vector.broadcast %132 : vector<16x1xf32> to vector<16x32xf32>
    %134 = arith.subf %124, %133 : vector<16x32xf32>
    %135 = arith.mulf %134, %134 : vector<16x32xf32>
    %cst_64 = arith.constant dense<0.000000e+00> : vector<16xf32>
    %136 = vector.multi_reduction <add>, %135, %cst_64 [1] : vector<16x32xf32> to vector<16xf32>
    %137 = vector.shape_cast %136 : vector<16xf32> to vector<16x1xf32>
    %cst_65 = arith.constant 3.200000e+01 : f32
    %138 = vector.broadcast %cst_65 : f32 to vector<16x1xf32>
    %139 = arith.divf %137, %138 : vector<16x1xf32>
    %140 = vector.broadcast %132 : vector<16x1xf32> to vector<16x32xf32>
    %141 = arith.subf %124, %140 : vector<16x32xf32>
    %cst_66 = arith.constant 9.99999996E-13 : f32
    %142 = vector.broadcast %cst_66 : f32 to vector<16x1xf32>
    %143 = arith.addf %139, %142 : vector<16x1xf32>
    %144 = math.rsqrt %143 : vector<16x1xf32>
    %145 = vector.broadcast %144 : vector<16x1xf32> to vector<16x32xf32>
    %146 = arith.mulf %141, %145 : vector<16x32xf32>
    %147 = vector.broadcast %126 : vector<1x32xf32> to vector<16x32xf32>
    %148 = arith.mulf %146, %147 : vector<16x32xf32>
    %149 = vector.broadcast %128 : vector<1x32xf32> to vector<16x32xf32>
    %150 = arith.addf %148, %149 : vector<16x32xf32>
    %151 = arith.truncf %150 : vector<16x32xf32> to vector<16x32xbf16>
    %c0_67 = arith.constant 0 : index
    %c0_68 = arith.constant 0 : index
    %c0_69 = arith.constant 0 : index
    %152 = vector.load %arg17[%c0_67, %c0_68, %c0_69] : memref<2x32x64xbf16, #tpu.memory_space<vmem>>, vector<1x32x64xbf16>
    %153 = vector.shape_cast %152 : vector<1x32x64xbf16> to vector<32x64xbf16>
    %cst_70 = arith.constant dense<0.000000e+00> : vector<16x64xf32>
    %154 = tpu.matmul %151, %153, %cst_70 {dimension_numbers = #tpu.dot_dimension_numbers<[1], [0], [0], [1], [0, 0, 1, 1], [], []>} : vector<16x32xbf16>, vector<32x64xbf16>, vector<16x64xf32> -> vector<16x64xf32>
    %c0_71 = arith.constant 0 : index
    %c0_72 = arith.constant 0 : index
    %c0_73 = arith.constant 0 : index
    %155 = vector.load %arg18[%c0_71, %c0_72, %c0_73] : memref<2x1x64xf32, #tpu.memory_space<vmem>>, vector<1x1x64xf32>
    %156 = vector.shape_cast %155 : vector<1x1x64xf32> to vector<1x64xf32>
    %157 = vector.broadcast %156 : vector<1x64xf32> to vector<16x64xf32>
    %158 = arith.addf %154, %157 : vector<16x64xf32>
    %159 = arith.mulf %158, %158 : vector<16x64xf32>
    %160 = arith.mulf %158, %159 : vector<16x64xf32>
    %cst_74 = arith.constant 4.471500e-02 : f32
    %161 = vector.broadcast %cst_74 : f32 to vector<16x64xf32>
    %162 = arith.mulf %161, %160 : vector<16x64xf32>
    %163 = arith.addf %158, %162 : vector<16x64xf32>
    %cst_75 = arith.constant 0.797884583 : f32
    %164 = vector.broadcast %cst_75 : f32 to vector<16x64xf32>
    %165 = arith.mulf %164, %163 : vector<16x64xf32>
    %166 = math.tanh %165 : vector<16x64xf32>
    %cst_76 = arith.constant 1.000000e+00 : f32
    %167 = vector.broadcast %cst_76 : f32 to vector<16x64xf32>
    %168 = arith.addf %167, %166 : vector<16x64xf32>
    %cst_77 = arith.constant 5.000000e-01 : f32
    %169 = vector.broadcast %cst_77 : f32 to vector<16x64xf32>
    %170 = arith.mulf %169, %168 : vector<16x64xf32>
    %171 = arith.mulf %158, %170 : vector<16x64xf32>
    %172 = arith.truncf %171 : vector<16x64xf32> to vector<16x64xbf16>
    %c0_78 = arith.constant 0 : index
    %c0_79 = arith.constant 0 : index
    %c0_80 = arith.constant 0 : index
    %173 = vector.load %arg19[%c0_78, %c0_79, %c0_80] : memref<2x64x32xbf16, #tpu.memory_space<vmem>>, vector<1x64x32xbf16>
    %174 = vector.shape_cast %173 : vector<1x64x32xbf16> to vector<64x32xbf16>
    %cst_81 = arith.constant dense<0.000000e+00> : vector<16x32xf32>
    %175 = tpu.matmul %172, %174, %cst_81 {dimension_numbers = #tpu.dot_dimension_numbers<[1], [0], [0], [1], [0, 0, 1, 1], [], []>} : vector<16x64xbf16>, vector<64x32xbf16>, vector<16x32xf32> -> vector<16x32xf32>
    %c0_82 = arith.constant 0 : index
    %c0_83 = arith.constant 0 : index
    %c0_84 = arith.constant 0 : index
    %176 = vector.load %arg20[%c0_82, %c0_83, %c0_84] : memref<2x1x32xf32, #tpu.memory_space<vmem>>, vector<1x1x32xf32>
    %177 = vector.shape_cast %176 : vector<1x1x32xf32> to vector<1x32xf32>
    %178 = vector.broadcast %177 : vector<1x32xf32> to vector<16x32xf32>
    %179 = arith.addf %175, %178 : vector<16x32xf32>
    %180 = arith.addf %179, %150 : vector<16x32xf32>
    %c0_85 = arith.constant 0 : index
    %c0_86 = arith.constant 0 : index
    %c0_87 = arith.constant 0 : index
    %181 = vector.load %arg21[%c0_85, %c0_86, %c0_87] : memref<2x1x32xf32, #tpu.memory_space<vmem>>, vector<1x1x32xf32>
    %182 = vector.shape_cast %181 : vector<1x1x32xf32> to vector<1x32xf32>
    %c0_88 = arith.constant 0 : index
    %c0_89 = arith.constant 0 : index
    %c0_90 = arith.constant 0 : index
    %183 = vector.load %arg22[%c0_88, %c0_89, %c0_90] : memref<2x1x32xf32, #tpu.memory_space<vmem>>, vector<1x1x32xf32>
    %184 = vector.shape_cast %183 : vector<1x1x32xf32> to vector<1x32xf32>
    %cst_91 = arith.constant dense<0.000000e+00> : vector<16xf32>
    %185 = vector.multi_reduction <add>, %180, %cst_91 [1] : vector<16x32xf32> to vector<16xf32>
    %186 = vector.shape_cast %185 : vector<16xf32> to vector<16x1xf32>
    %cst_92 = arith.constant 3.200000e+01 : f32
    %187 = vector.broadcast %cst_92 : f32 to vector<16x1xf32>
    %188 = arith.divf %186, %187 : vector<16x1xf32>
    %189 = vector.broadcast %188 : vector<16x1xf32> to vector<16x32xf32>
    %190 = arith.subf %180, %189 : vector<16x32xf32>
    %191 = arith.mulf %190, %190 : vector<16x32xf32>
    %cst_93 = arith.constant dense<0.000000e+00> : vector<16xf32>
    %192 = vector.multi_reduction <add>, %191, %cst_93 [1] : vector<16x32xf32> to vector<16xf32>
    %193 = vector.shape_cast %192 : vector<16xf32> to vector<16x1xf32>
    %cst_94 = arith.constant 3.200000e+01 : f32
    %194 = vector.broadcast %cst_94 : f32 to vector<16x1xf32>
    %195 = arith.divf %193, %194 : vector<16x1xf32>
    %196 = vector.broadcast %188 : vector<16x1xf32> to vector<16x32xf32>
    %197 = arith.subf %180, %196 : vector<16x32xf32>
    %cst_95 = arith.constant 9.99999996E-13 : f32
    %198 = vector.broadcast %cst_95 : f32 to vector<16x1xf32>
    %199 = arith.addf %195, %198 : vector<16x1xf32>
    %200 = math.rsqrt %199 : vector<16x1xf32>
    %201 = vector.broadcast %200 : vector<16x1xf32> to vector<16x32xf32>
    %202 = arith.mulf %197, %201 : vector<16x32xf32>
    %203 = vector.broadcast %182 : vector<1x32xf32> to vector<16x32xf32>
    %204 = arith.mulf %202, %203 : vector<16x32xf32>
    %205 = vector.broadcast %184 : vector<1x32xf32> to vector<16x32xf32>
    %206 = arith.addf %204, %205 : vector<16x32xf32>
    %207 = arith.truncf %206 : vector<16x32xf32> to vector<16x32xbf16>
    %c1_96 = arith.constant 1 : index
    %c0_97 = arith.constant 0 : index
    %c0_98 = arith.constant 0 : index
    %208 = vector.load %arg11[%c1_96, %c0_97, %c0_98] : memref<2x32x96xbf16, #tpu.memory_space<vmem>>, vector<1x32x96xbf16>
    %209 = vector.shape_cast %208 : vector<1x32x96xbf16> to vector<32x96xbf16>
    %cst_99 = arith.constant dense<0.000000e+00> : vector<16x96xf32>
    %210 = tpu.matmul %207, %209, %cst_99 {dimension_numbers = #tpu.dot_dimension_numbers<[1], [0], [0], [1], [0, 0, 1, 1], [], []>} : vector<16x32xbf16>, vector<32x96xbf16>, vector<16x96xf32> -> vector<16x96xf32>
    %c1_100 = arith.constant 1 : index
    %c0_101 = arith.constant 0 : index
    %c0_102 = arith.constant 0 : index
    %211 = vector.load %arg12[%c1_100, %c0_101, %c0_102] : memref<2x1x96xf32, #tpu.memory_space<vmem>>, vector<1x1x96xf32>
    %212 = vector.shape_cast %211 : vector<1x1x96xf32> to vector<1x96xf32>
    %213 = vector.broadcast %212 : vector<1x96xf32> to vector<16x96xf32>
    %214 = arith.addf %210, %213 : vector<16x96xf32>
    %215 = arith.truncf %214 : vector<16x96xf32> to vector<16x96xbf16>
    %216 = vector.extract_strided_slice %215 {offsets = [0, 0], sizes = [16, 16], strides = [1, 1]} : vector<16x96xbf16> to vector<16x16xbf16>
    %217 = vector.extract_strided_slice %215 {offsets = [0, 32], sizes = [16, 16], strides = [1, 1]} : vector<16x96xbf16> to vector<16x16xbf16>
    %218 = vector.extract_strided_slice %215 {offsets = [0, 64], sizes = [16, 16], strides = [1, 1]} : vector<16x96xbf16> to vector<16x16xbf16>
    %cst_103 = arith.constant dense<0.000000e+00> : vector<16x16xf32>
    %219 = tpu.matmul %216, %217, %cst_103 {dimension_numbers = #tpu.dot_dimension_numbers<[1], [1], [0], [0], [0, 0, 1, 0], [], []>} : vector<16x16xbf16>, vector<16x16xbf16>, vector<16x16xf32> -> vector<16x16xf32>
    %220 = arith.addf %219, %71 : vector<16x16xf32>
    %cst_104 = arith.constant dense<0xFF800000> : vector<16xf32>
    %221 = vector.multi_reduction <maximumf>, %220, %cst_104 [1] : vector<16x16xf32> to vector<16xf32>
    %222 = vector.shape_cast %221 : vector<16xf32> to vector<16x1xf32>
    %223 = vector.broadcast %222 : vector<16x1xf32> to vector<16x16xf32>
    %224 = arith.subf %220, %223 : vector<16x16xf32>
    %225 = math.exp %224 : vector<16x16xf32>
    %cst_105 = arith.constant dense<0.000000e+00> : vector<16xf32>
    %226 = vector.multi_reduction <add>, %225, %cst_105 [1] : vector<16x16xf32> to vector<16xf32>
    %227 = vector.shape_cast %226 : vector<16xf32> to vector<16x1xf32>
    %228 = tpu.reciprocal %227 {approx = true} : vector<16x1xf32> -> vector<16x1xf32>
    %229 = vector.broadcast %228 : vector<16x1xf32> to vector<16x16xf32>
    %230 = arith.mulf %225, %229 : vector<16x16xf32>
    %231 = arith.truncf %230 : vector<16x16xf32> to vector<16x16xbf16>
    %cst_106 = arith.constant dense<0.000000e+00> : vector<16x16xf32>
    %232 = tpu.matmul %231, %218, %cst_106 {dimension_numbers = #tpu.dot_dimension_numbers<[1], [0], [0], [1], [0, 0, 1, 1], [], []>} : vector<16x16xbf16>, vector<16x16xbf16>, vector<16x16xf32> -> vector<16x16xf32>
    %233 = vector.extract_strided_slice %215 {offsets = [0, 16], sizes = [16, 16], strides = [1, 1]} : vector<16x96xbf16> to vector<16x16xbf16>
    %234 = vector.extract_strided_slice %215 {offsets = [0, 48], sizes = [16, 16], strides = [1, 1]} : vector<16x96xbf16> to vector<16x16xbf16>
    %235 = vector.extract_strided_slice %215 {offsets = [0, 80], sizes = [16, 16], strides = [1, 1]} : vector<16x96xbf16> to vector<16x16xbf16>
    %cst_107 = arith.constant dense<0.000000e+00> : vector<16x16xf32>
    %236 = tpu.matmul %233, %234, %cst_107 {dimension_numbers = #tpu.dot_dimension_numbers<[1], [1], [0], [0], [0, 0, 1, 0], [], []>} : vector<16x16xbf16>, vector<16x16xbf16>, vector<16x16xf32> -> vector<16x16xf32>
    %237 = arith.addf %236, %71 : vector<16x16xf32>
    %cst_108 = arith.constant dense<0xFF800000> : vector<16xf32>
    %238 = vector.multi_reduction <maximumf>, %237, %cst_108 [1] : vector<16x16xf32> to vector<16xf32>
    %239 = vector.shape_cast %238 : vector<16xf32> to vector<16x1xf32>
    %240 = vector.broadcast %239 : vector<16x1xf32> to vector<16x16xf32>
    %241 = arith.subf %237, %240 : vector<16x16xf32>
    %242 = math.exp %241 : vector<16x16xf32>
    %cst_109 = arith.constant dense<0.000000e+00> : vector<16xf32>
    %243 = vector.multi_reduction <add>, %242, %cst_109 [1] : vector<16x16xf32> to vector<16xf32>
    %244 = vector.shape_cast %243 : vector<16xf32> to vector<16x1xf32>
    %245 = tpu.reciprocal %244 {approx = true} : vector<16x1xf32> -> vector<16x1xf32>
    %246 = vector.broadcast %245 : vector<16x1xf32> to vector<16x16xf32>
    %247 = arith.mulf %242, %246 : vector<16x16xf32>
    %248 = arith.truncf %247 : vector<16x16xf32> to vector<16x16xbf16>
    %cst_110 = arith.constant dense<0.000000e+00> : vector<16x16xf32>
    %249 = tpu.matmul %248, %235, %cst_110 {dimension_numbers = #tpu.dot_dimension_numbers<[1], [0], [0], [1], [0, 0, 1, 1], [], []>} : vector<16x16xbf16>, vector<16x16xbf16>, vector<16x16xf32> -> vector<16x16xf32>
    %250 = tpu.concatenate %232, %249 in 1 : vector<16x16xf32>, vector<16x16xf32> -> vector<16x32xf32>
    %251 = arith.truncf %250 : vector<16x32xf32> to vector<16x32xbf16>
    %c1_111 = arith.constant 1 : index
    %c0_112 = arith.constant 0 : index
    %c0_113 = arith.constant 0 : index
    %252 = vector.load %arg13[%c1_111, %c0_112, %c0_113] : memref<2x32x32xbf16, #tpu.memory_space<vmem>>, vector<1x32x32xbf16>
    %253 = vector.shape_cast %252 : vector<1x32x32xbf16> to vector<32x32xbf16>
    %cst_114 = arith.constant dense<0.000000e+00> : vector<16x32xf32>
    %254 = tpu.matmul %251, %253, %cst_114 {dimension_numbers = #tpu.dot_dimension_numbers<[1], [0], [0], [1], [0, 0, 1, 1], [], []>} : vector<16x32xbf16>, vector<32x32xbf16>, vector<16x32xf32> -> vector<16x32xf32>
    %c1_115 = arith.constant 1 : index
    %c0_116 = arith.constant 0 : index
    %c0_117 = arith.constant 0 : index
    %255 = vector.load %arg14[%c1_115, %c0_116, %c0_117] : memref<2x1x32xf32, #tpu.memory_space<vmem>>, vector<1x1x32xf32>
    %256 = vector.shape_cast %255 : vector<1x1x32xf32> to vector<1x32xf32>
    %257 = vector.broadcast %256 : vector<1x32xf32> to vector<16x32xf32>
    %258 = arith.addf %254, %257 : vector<16x32xf32>
    %259 = arith.addf %258, %206 : vector<16x32xf32>
    %c1_118 = arith.constant 1 : index
    %c0_119 = arith.constant 0 : index
    %c0_120 = arith.constant 0 : index
    %260 = vector.load %arg15[%c1_118, %c0_119, %c0_120] : memref<2x1x32xf32, #tpu.memory_space<vmem>>, vector<1x1x32xf32>
    %261 = vector.shape_cast %260 : vector<1x1x32xf32> to vector<1x32xf32>
    %c1_121 = arith.constant 1 : index
    %c0_122 = arith.constant 0 : index
    %c0_123 = arith.constant 0 : index
    %262 = vector.load %arg16[%c1_121, %c0_122, %c0_123] : memref<2x1x32xf32, #tpu.memory_space<vmem>>, vector<1x1x32xf32>
    %263 = vector.shape_cast %262 : vector<1x1x32xf32> to vector<1x32xf32>
    %cst_124 = arith.constant dense<0.000000e+00> : vector<16xf32>
    %264 = vector.multi_reduction <add>, %259, %cst_124 [1] : vector<16x32xf32> to vector<16xf32>
    %265 = vector.shape_cast %264 : vector<16xf32> to vector<16x1xf32>
    %cst_125 = arith.constant 3.200000e+01 : f32
    %266 = vector.broadcast %cst_125 : f32 to vector<16x1xf32>
    %267 = arith.divf %265, %266 : vector<16x1xf32>
    %268 = vector.broadcast %267 : vector<16x1xf32> to vector<16x32xf32>
    %269 = arith.subf %259, %268 : vector<16x32xf32>
    %270 = arith.mulf %269, %269 : vector<16x32xf32>
    %cst_126 = arith.constant dense<0.000000e+00> : vector<16xf32>
    %271 = vector.multi_reduction <add>, %270, %cst_126 [1] : vector<16x32xf32> to vector<16xf32>
    %272 = vector.shape_cast %271 : vector<16xf32> to vector<16x1xf32>
    %cst_127 = arith.constant 3.200000e+01 : f32
    %273 = vector.broadcast %cst_127 : f32 to vector<16x1xf32>
    %274 = arith.divf %272, %273 : vector<16x1xf32>
    %275 = vector.broadcast %267 : vector<16x1xf32> to vector<16x32xf32>
    %276 = arith.subf %259, %275 : vector<16x32xf32>
    %cst_128 = arith.constant 9.99999996E-13 : f32
    %277 = vector.broadcast %cst_128 : f32 to vector<16x1xf32>
    %278 = arith.addf %274, %277 : vector<16x1xf32>
    %279 = math.rsqrt %278 : vector<16x1xf32>
    %280 = vector.broadcast %279 : vector<16x1xf32> to vector<16x32xf32>
    %281 = arith.mulf %276, %280 : vector<16x32xf32>
    %282 = vector.broadcast %261 : vector<1x32xf32> to vector<16x32xf32>
    %283 = arith.mulf %281, %282 : vector<16x32xf32>
    %284 = vector.broadcast %263 : vector<1x32xf32> to vector<16x32xf32>
    %285 = arith.addf %283, %284 : vector<16x32xf32>
    %286 = arith.truncf %285 : vector<16x32xf32> to vector<16x32xbf16>
    %c1_129 = arith.constant 1 : index
    %c0_130 = arith.constant 0 : index
    %c0_131 = arith.constant 0 : index
    %287 = vector.load %arg17[%c1_129, %c0_130, %c0_131] : memref<2x32x64xbf16, #tpu.memory_space<vmem>>, vector<1x32x64xbf16>
    %288 = vector.shape_cast %287 : vector<1x32x64xbf16> to vector<32x64xbf16>
    %cst_132 = arith.constant dense<0.000000e+00> : vector<16x64xf32>
    %289 = tpu.matmul %286, %288, %cst_132 {dimension_numbers = #tpu.dot_dimension_numbers<[1], [0], [0], [1], [0, 0, 1, 1], [], []>} : vector<16x32xbf16>, vector<32x64xbf16>, vector<16x64xf32> -> vector<16x64xf32>
    %c1_133 = arith.constant 1 : index
    %c0_134 = arith.constant 0 : index
    %c0_135 = arith.constant 0 : index
    %290 = vector.load %arg18[%c1_133, %c0_134, %c0_135] : memref<2x1x64xf32, #tpu.memory_space<vmem>>, vector<1x1x64xf32>
    %291 = vector.shape_cast %290 : vector<1x1x64xf32> to vector<1x64xf32>
    %292 = vector.broadcast %291 : vector<1x64xf32> to vector<16x64xf32>
    %293 = arith.addf %289, %292 : vector<16x64xf32>
    %294 = arith.mulf %293, %293 : vector<16x64xf32>
    %295 = arith.mulf %293, %294 : vector<16x64xf32>
    %cst_136 = arith.constant 4.471500e-02 : f32
    %296 = vector.broadcast %cst_136 : f32 to vector<16x64xf32>
    %297 = arith.mulf %296, %295 : vector<16x64xf32>
    %298 = arith.addf %293, %297 : vector<16x64xf32>
    %cst_137 = arith.constant 0.797884583 : f32
    %299 = vector.broadcast %cst_137 : f32 to vector<16x64xf32>
    %300 = arith.mulf %299, %298 : vector<16x64xf32>
    %301 = math.tanh %300 : vector<16x64xf32>
    %cst_138 = arith.constant 1.000000e+00 : f32
    %302 = vector.broadcast %cst_138 : f32 to vector<16x64xf32>
    %303 = arith.addf %302, %301 : vector<16x64xf32>
    %cst_139 = arith.constant 5.000000e-01 : f32
    %304 = vector.broadcast %cst_139 : f32 to vector<16x64xf32>
    %305 = arith.mulf %304, %303 : vector<16x64xf32>
    %306 = arith.mulf %293, %305 : vector<16x64xf32>
    %307 = arith.truncf %306 : vector<16x64xf32> to vector<16x64xbf16>
    %c1_140 = arith.constant 1 : index
    %c0_141 = arith.constant 0 : index
    %c0_142 = arith.constant 0 : index
    %308 = vector.load %arg19[%c1_140, %c0_141, %c0_142] : memref<2x64x32xbf16, #tpu.memory_space<vmem>>, vector<1x64x32xbf16>
    %309 = vector.shape_cast %308 : vector<1x64x32xbf16> to vector<64x32xbf16>
    %cst_143 = arith.constant dense<0.000000e+00> : vector<16x32xf32>
    %310 = tpu.matmul %307, %309, %cst_143 {dimension_numbers = #tpu.dot_dimension_numbers<[1], [0], [0], [1], [0, 0, 1, 1], [], []>} : vector<16x64xbf16>, vector<64x32xbf16>, vector<16x32xf32> -> vector<16x32xf32>
    %c1_144 = arith.constant 1 : index
    %c0_145 = arith.constant 0 : index
    %c0_146 = arith.constant 0 : index
    %311 = vector.load %arg20[%c1_144, %c0_145, %c0_146] : memref<2x1x32xf32, #tpu.memory_space<vmem>>, vector<1x1x32xf32>
    %312 = vector.shape_cast %311 : vector<1x1x32xf32> to vector<1x32xf32>
    %313 = vector.broadcast %312 : vector<1x32xf32> to vector<16x32xf32>
    %314 = arith.addf %310, %313 : vector<16x32xf32>
    %315 = arith.addf %314, %285 : vector<16x32xf32>
    %c1_147 = arith.constant 1 : index
    %c0_148 = arith.constant 0 : index
    %c0_149 = arith.constant 0 : index
    %316 = vector.load %arg21[%c1_147, %c0_148, %c0_149] : memref<2x1x32xf32, #tpu.memory_space<vmem>>, vector<1x1x32xf32>
    %317 = vector.shape_cast %316 : vector<1x1x32xf32> to vector<1x32xf32>
    %c1_150 = arith.constant 1 : index
    %c0_151 = arith.constant 0 : index
    %c0_152 = arith.constant 0 : index
    %318 = vector.load %arg22[%c1_150, %c0_151, %c0_152] : memref<2x1x32xf32, #tpu.memory_space<vmem>>, vector<1x1x32xf32>
    %319 = vector.shape_cast %318 : vector<1x1x32xf32> to vector<1x32xf32>
    %cst_153 = arith.constant dense<0.000000e+00> : vector<16xf32>
    %320 = vector.multi_reduction <add>, %315, %cst_153 [1] : vector<16x32xf32> to vector<16xf32>
    %321 = vector.shape_cast %320 : vector<16xf32> to vector<16x1xf32>
    %cst_154 = arith.constant 3.200000e+01 : f32
    %322 = vector.broadcast %cst_154 : f32 to vector<16x1xf32>
    %323 = arith.divf %321, %322 : vector<16x1xf32>
    %324 = vector.broadcast %323 : vector<16x1xf32> to vector<16x32xf32>
    %325 = arith.subf %315, %324 : vector<16x32xf32>
    %326 = arith.mulf %325, %325 : vector<16x32xf32>
    %cst_155 = arith.constant dense<0.000000e+00> : vector<16xf32>
    %327 = vector.multi_reduction <add>, %326, %cst_155 [1] : vector<16x32xf32> to vector<16xf32>
    %328 = vector.shape_cast %327 : vector<16xf32> to vector<16x1xf32>
    %cst_156 = arith.constant 3.200000e+01 : f32
    %329 = vector.broadcast %cst_156 : f32 to vector<16x1xf32>
    %330 = arith.divf %328, %329 : vector<16x1xf32>
    %331 = vector.broadcast %323 : vector<16x1xf32> to vector<16x32xf32>
    %332 = arith.subf %315, %331 : vector<16x32xf32>
    %cst_157 = arith.constant 9.99999996E-13 : f32
    %333 = vector.broadcast %cst_157 : f32 to vector<16x1xf32>
    %334 = arith.addf %330, %333 : vector<16x1xf32>
    %335 = math.rsqrt %334 : vector<16x1xf32>
    %336 = vector.broadcast %335 : vector<16x1xf32> to vector<16x32xf32>
    %337 = arith.mulf %332, %336 : vector<16x32xf32>
    %338 = vector.broadcast %317 : vector<1x32xf32> to vector<16x32xf32>
    %339 = arith.mulf %337, %338 : vector<16x32xf32>
    %340 = vector.broadcast %319 : vector<1x32xf32> to vector<16x32xf32>
    %341 = arith.addf %339, %340 : vector<16x32xf32>
    %c0_158 = arith.constant 0 : index
    %c0_159 = arith.constant 0 : index
    %342 = vector.load %arg23[%c0_158, %c0_159] : memref<16x32xf32, #tpu.memory_space<vmem>>, vector<16x32xf32>
    tpu.vector_store %arg23[%c0_158, %c0_159], %341 {strides = array<i32>} : memref<16x32xf32, #tpu.memory_space<vmem>>, vector<16x32xf32>,
    return
  }
}

</mosaic_0001>

<llo_original>
// kernel: tile.0
$region0: #{tile.0}
  %s0 = inlined_call_operand.vmem [shape: s32[2,8], index: 0, kind: input, shape index: {}]
  %s1 = inlined_call_operand.vmem [shape: s32[16,1], index: 1, kind: output, shape index: {}]
  $region1: #{tile.0} parent=0
    #allocation0 [shape = 'u8[4096]{0}', space=vmem, size = 0x1000, scoped, tag = 'scoped mem for input reshape']
    %s3 = ssub.s32 4, 1
    %v4 = vld [vmem:[%s0] sm:%s3]
    %5 = vst [vmem:[#allocation0] sm:%s3] %v4
    %v6 = vld [vmem:[#allocation0] sm:$0x3]
    %vm7 = vcmask 7168
    %8 = vst.msk [vmem:[%s1] ss:$8 sm:$0x3] %vm7, %v6
    %v9 = vld [vmem:[#allocation0] sm:$0x3]
    %10 = vrot.lane.b32.xlu0 %v9, 127
    %v11 = vpop.permute.xlu0 %10
    %vm12 = vcmask 7168
    %s13 = scalar_lea.vmem %s1, 1
    %14 = vst.msk [vmem:[%s13] ss:$8 sm:$0x3] %vm12, %v11
    %v15 = vld [vmem:[#allocation0] sm:$0x3]
    %16 = vrot.lane.b32.xlu0 %v15, 126
    %v17 = vpop.permute.xlu0 %16
    %vm18 = vcmask 7168
    %s19 = scalar_lea.vmem %s1, 2
    %20 = vst.msk [vmem:[%s19] ss:$8 sm:$0x3] %vm18, %v17
    %v21 = vld [vmem:[#allocation0] sm:$0x3]
    %22 = vrot.lane.b32.xlu0 %v21, 125
    %v23 = vpop.permute.xlu0 %22
    %vm24 = vcmask 7168
    %s25 = scalar_lea.vmem %s1, 3
    %26 = vst.msk [vmem:[%s25] ss:$8 sm:$0x3] %vm24, %v23
    %v27 = vld [vmem:[#allocation0] sm:$0x3]
    %28 = vrot.lane.b32.xlu0 %v27, 124
    %v29 = vpop.permute.xlu0 %28
    %vm30 = vcmask 7168
    %s31 = scalar_lea.vmem %s1, 4
    %32 = vst.msk [vmem:[%s31] ss:$8 sm:$0x3] %vm30, %v29
    %v33 = vld [vmem:[#allocation0] sm:$0x3]
    %34 = vrot.lane.b32.xlu0 %v33, 123
    %v35 = vpop.permute.xlu0 %34
    %vm36 = vcmask 7168
    %s37 = scalar_lea.vmem %s1, 5
    %38 = vst.msk [vmem:[%s37] ss:$8 sm:$0x3] %vm36, %v35
    %v39 = vld [vmem:[#allocation0] sm:$0x3]
    %40 = vrot.lane.b32.xlu0 %v39, 122
    %v41 = vpop.permute.xlu0 %40
    %vm42 = vcmask 7168
    %s43 = scalar_lea.vmem %s1, 6
    %44 = vst.msk [vmem:[%s43] ss:$8 sm:$0x3] %vm42, %v41
    %v45 = vld [vmem:[#allocation0] sm:$0x3]
    %46 = vrot.lane.b32.xlu0 %v45, 121
    %v47 = vpop.permute.xlu0 %46
    %vm48 = vcmask 7168
    %s49 = scalar_lea.vmem %s1, 7
    %50 = vst.msk [vmem:[%s49] ss:$8 sm:$0x3] %vm48, %v47

// kernel: language_embedding_forward.1
$region0: #{language_embedding_forward.1}
  #allocation0 [shape = 'u32[]', space=smem, size = 0x4, offset = 0x4, fixed_abs, tag = 'smem constant byte address 0x4 - core index']
  #allocation1 [shape = 'u32[72,128]{1,0:T(1,128)}', space=vmem, size = 0x9000, scoped, tag = 'internal scratch']
  %s0 = inlined_call_operand.vmem [shape: s32[16,1], index: 0, kind: input, shape index: {}]
  %s1 = inlined_call_operand.vmem [shape: s32[16,1], index: 1, kind: input, shape index: {}]
  %s2 = inlined_call_operand.vmem [shape: s32[16,1], index: 2, kind: input, shape index: {}]
  %s3 = inlined_call_operand.vmem [shape: s32[16,1], index: 3, kind: input, shape index: {}]
  %s4 = inlined_call_operand.vmem [shape: s32[1,16], index: 4, kind: input, shape index: {}]
  %s5 = inlined_call_operand.vmem [shape: f32[1,16], index: 5, kind: input, shape index: {}]
  %s6 = inlined_call_operand.vmem [shape: f32[50,32], index: 6, kind: input, shape index: {}]
  %s7 = inlined_call_operand.vmem [shape: f32[16,32], index: 7, kind: input, shape index: {}]
  %s8 = inlined_call_operand.vmem [shape: f32[2,32], index: 8, kind: input, shape index: {}]
  %s9 = inlined_call_operand.vmem [shape: f32[1,32], index: 9, kind: input, shape index: {}]
  %s10 = inlined_call_operand.vmem [shape: f32[1,32], index: 10, kind: input, shape index: {}]
  %s11 = inlined_call_operand.vmem [shape: bf16[2,32,96], index: 11, kind: input, shape index: {}]
  %s12 = inlined_call_operand.vmem [shape: f32[2,1,96], index: 12, kind: input, shape index: {}]
  %s13 = inlined_call_operand.vmem [shape: bf16[2,32,32], index: 13, kind: input, shape index: {}]
  %s14 = inlined_call_operand.vmem [shape: f32[2,1,32], index: 14, kind: input, shape index: {}]
  %s15 = inlined_call_operand.vmem [shape: f32[2,1,32], index: 15, kind: input, shape index: {}]
  %s16 = inlined_call_operand.vmem [shape: f32[2,1,32], index: 16, kind: input, shape index: {}]
  %s17 = inlined_call_operand.vmem [shape: bf16[2,32,64], index: 17, kind: input, shape index: {}]
  %s18 = inlined_call_operand.vmem [shape: f32[2,1,64], index: 18, kind: input, shape index: {}]
  %s19 = inlined_call_operand.vmem [shape: bf16[2,64,32], index: 19, kind: input, shape index: {}]
  %s20 = inlined_call_operand.vmem [shape: f32[2,1,32], index: 20, kind: input, shape index: {}]
  %s21 = inlined_call_operand.vmem [shape: f32[2,1,32], index: 21, kind: input, shape index: {}]
  %s22 = inlined_call_operand.vmem [shape: f32[2,1,32], index: 22, kind: input, shape index: {}]
  %s23 = inlined_call_operand.hbm [shape: f32[16,32], index: 23, kind: output, shape index: {}]
  %s24 = sld [smem:[#allocation0]]
  $region102: #{language_embedding_forward.1} parent=0
    _
  %s26 = ssub.s32 1, %s24
  %s27 = scalar_select 0, %s26, %s24
  $region1: #{language_embedding_forward.1} parent=0
    #allocation2 [shape = 'u8[8192]{0}', space=vmem, size = 0x2000, scoped, tag = 'output window, operand 0, single buffered']
    #allocation3 [shape = 's32[1]{0}', space=sflag, size = 0x4, scoped, tag = 'scoped memory for language_embedding_forward.1']
    %28 = vsyncpa [#allocation3], 0
    // Predicated region
    $region2: #{language_embedding_forward.1} parent=1 // pred_check
      _
    $region3: #{language_embedding_forward.1} parent=1 // pred_check_branch
      %30 = sbr.rel (0) target = $region5
    $region4: #{language_embedding_forward.1} parent=1 // pred_region
      _
    $region5: #{language_embedding_forward.1} parent=1 // pred_fallthru
      _
    // Predicated region
    $region6: #{language_embedding_forward.1} parent=1 // pred_check
      _
    $region7: #{language_embedding_forward.1} parent=1 // pred_check_branch
      %32 = sbr.rel (0) target = $region9
    $region8: #{language_embedding_forward.1} parent=1 // pred_region
      _
    $region9: #{language_embedding_forward.1} parent=1 // pred_fallthru
      _
    // Predicated region
    $region10: #{language_embedding_forward.1} parent=1 // pred_check
      _
    $region11: #{language_embedding_forward.1} parent=1 // pred_check_branch
      %34 = sbr.rel (0) target = $region13
    $region12: #{language_embedding_forward.1} parent=1 // pred_region
      _
    $region13: #{language_embedding_forward.1} parent=1 // pred_fallthru
      _
    // Predicated region
    $region14: #{language_embedding_forward.1} parent=1 // pred_check
      _
    $region15: #{language_embedding_forward.1} parent=1 // pred_check_branch
      %36 = sbr.rel (0) target = $region17
    $region16: #{language_embedding_forward.1} parent=1 // pred_region
      _
    $region17: #{language_embedding_forward.1} parent=1 // pred_fallthru
      _
    // Predicated region
    $region18: #{language_embedding_forward.1} parent=1 // pred_check
      _
    $region19: #{language_embedding_forward.1} parent=1 // pred_check_branch
      %38 = sbr.rel (0) target = $region21
    $region20: #{language_embedding_forward.1} parent=1 // pred_region
      _
    $region21: #{language_embedding_forward.1} parent=1 // pred_fallthru
      _
    // Predicated region
    $region22: #{language_embedding_forward.1} parent=1 // pred_check
      _
    $region23: #{language_embedding_forward.1} parent=1 // pred_check_branch
      %40 = sbr.rel (0) target = $region25
    $region24: #{language_embedding_forward.1} parent=1 // pred_region
      _
    $region25: #{language_embedding_forward.1} parent=1 // pred_fallthru
      _
    // Predicated region
    $region26: #{language_embedding_forward.1} parent=1 // pred_check
      _
    $region27: #{language_embedding_forward.1} parent=1 // pred_check_branch
      %42 = sbr.rel (0) target = $region29
    $region28: #{language_embedding_forward.1} parent=1 // pred_region
      _
    $region29: #{language_embedding_forward.1} parent=1 // pred_fallthru
      _
    // Predicated region
    $region30: #{language_embedding_forward.1} parent=1 // pred_check
      _
    $region31: #{language_embedding_forward.1} parent=1 // pred_check_branch
      %44 = sbr.rel (0) target = $region33
    $region32: #{language_embedding_forward.1} parent=1 // pred_region
      _
    $region33: #{language_embedding_forward.1} parent=1 // pred_fallthru
      _
    // Predicated region
    $region34: #{language_embedding_forward.1} parent=1 // pred_check
      _
    $region35: #{language_embedding_forward.1} parent=1 // pred_check_branch
      %46 = sbr.rel (0) target = $region37
    $region36: #{language_embedding_forward.1} parent=1 // pred_region
      _
    $region37: #{language_embedding_forward.1} parent=1 // pred_fallthru
      _
    // Predicated region
    $region38: #{language_embedding_forward.1} parent=1 // pred_check
      _
    $region39: #{language_embedding_forward.1} parent=1 // pred_check_branch
      %48 = sbr.rel (0) target = $region41
    $region40: #{language_embedding_forward.1} parent=1 // pred_region
      _
    $region41: #{language_embedding_forward.1} parent=1 // pred_fallthru
      _
    // Predicated region
    $region42: #{language_embedding_forward.1} parent=1 // pred_check
      _
    $region43: #{language_embedding_forward.1} parent=1 // pred_check_branch
      %50 = sbr.rel (0) target = $region45
    $region44: #{language_embedding_forward.1} parent=1 // pred_region
      _
    $region45: #{language_embedding_forward.1} parent=1 // pred_fallthru
      _
    // Predicated region
    $region46: #{language_embedding_forward.1} parent=1 // pred_check
      _
    $region47: #{language_embedding_forward.1} parent=1 // pred_check_branch
      %52 = sbr.rel (0) target = $region49
    $region48: #{language_embedding_forward.1} parent=1 // pred_region
      _
    $region49: #{language_embedding_forward.1} parent=1 // pred_fallthru
      _
    // Predicated region
    $region50: #{language_embedding_forward.1} parent=1 // pred_check
      _
    $region51: #{language_embedding_forward.1} parent=1 // pred_check_branch
      %54 = sbr.rel (0) target = $region53
    $region52: #{language_embedding_forward.1} parent=1 // pred_region
      _
    $region53: #{language_embedding_forward.1} parent=1 // pred_fallthru
      _
    // Predicated region
    $region54: #{language_embedding_forward.1} parent=1 // pred_check
      _
    $region55: #{language_embedding_forward.1} parent=1 // pred_check_branch
      %56 = sbr.rel (0) target = $region57
    $region56: #{language_embedding_forward.1} parent=1 // pred_region
      _
    $region57: #{language_embedding_forward.1} parent=1 // pred_fallthru
      _
    // Predicated region
    $region58: #{language_embedding_forward.1} parent=1 // pred_check
      _
    $region59: #{language_embedding_forward.1} parent=1 // pred_check_branch
      %58 = sbr.rel (0) target = $region61
    $region60: #{language_embedding_forward.1} parent=1 // pred_region
      _
    $region61: #{language_embedding_forward.1} parent=1 // pred_fallthru
      _
    // Predicated region
    $region62: #{language_embedding_forward.1} parent=1 // pred_check
      _
    $region63: #{language_embedding_forward.1} parent=1 // pred_check_branch
      %60 = sbr.rel (0) target = $region65
    $region64: #{language_embedding_forward.1} parent=1 // pred_region
      _
    $region65: #{language_embedding_forward.1} parent=1 // pred_fallthru
      _
    // Predicated region
    $region66: #{language_embedding_forward.1} parent=1 // pred_check
      _
    $region67: #{language_embedding_forward.1} parent=1 // pred_check_branch
      %62 = sbr.rel (0) target = $region69
    $region68: #{language_embedding_forward.1} parent=1 // pred_region
      _
    $region69: #{language_embedding_forward.1} parent=1 // pred_fallthru
      _
    // Predicated region
    $region70: #{language_embedding_forward.1} parent=1 // pred_check
      _
    $region71: #{language_embedding_forward.1} parent=1 // pred_check_branch
      %64 = sbr.rel (0) target = $region73
    $region72: #{language_embedding_forward.1} parent=1 // pred_region
      _
    $region73: #{language_embedding_forward.1} parent=1 // pred_fallthru
      _
    // Predicated region
    $region74: #{language_embedding_forward.1} parent=1 // pred_check
      _
    $region75: #{language_embedding_forward.1} parent=1 // pred_check_branch
      %66 = sbr.rel (0) target = $region77
    $region76: #{language_embedding_forward.1} parent=1 // pred_region
      _
    $region77: #{language_embedding_forward.1} parent=1 // pred_fallthru
      _
    // Predicated region
    $region78: #{language_embedding_forward.1} parent=1 // pred_check
      _
    $region79: #{language_embedding_forward.1} parent=1 // pred_check_branch
      %68 = sbr.rel (0) target = $region81
    $region80: #{language_embedding_forward.1} parent=1 // pred_region
      _
    $region81: #{language_embedding_forward.1} parent=1 // pred_fallthru
      _
    // Predicated region
    $region82: #{language_embedding_forward.1} parent=1 // pred_check
      _
    $region83: #{language_embedding_forward.1} parent=1 // pred_check_branch
      %70 = sbr.rel (0) target = $region85
    $region84: #{language_embedding_forward.1} parent=1 // pred_region
      _
    $region85: #{language_embedding_forward.1} parent=1 // pred_fallthru
      _
    // Predicated region
    $region86: #{language_embedding_forward.1} parent=1 // pred_check
      _
    $region87: #{language_embedding_forward.1} parent=1 // pred_check_branch
      %72 = sbr.rel (0) target = $region89
    $region88: #{language_embedding_forward.1} parent=1 // pred_region
      _
    $region89: #{language_embedding_forward.1} parent=1 // pred_fallthru
      _
    // Predicated region
    $region90: #{language_embedding_forward.1} parent=1 // pred_check
      _
    $region91: #{language_embedding_forward.1} parent=1 // pred_check_branch
      %74 = sbr.rel (0) target = $region93
    $region92: #{language_embedding_forward.1} parent=1 // pred_region
      _
    $region93: #{language_embedding_forward.1} parent=1 // pred_fallthru
      _
    %v76 = vlaneseq
    %v77 = vand.u32 %v76, 127
    %v78 = vld [vmem:[%s0] sm:$0xff]
    %v79 = vld [vmem:[%s0 + $0x8] sm:$0xff]
    %80 = vset.pattern.permute.xlu0 0
    %81 = vperm.xlu0 %80, %v78
    %v82 = vpop.permute.xlu0 %81
    %83 = vset.pattern.permute.xlu0 0
    %84 = vperm.xlu0 %83, %v79
    %v85 = vpop.permute.xlu0 %84
    %vm86 = vcmp.eq.s32.totalorder %v77, %v82
    %vm87 = vcmp.eq.s32.totalorder %v77, %v85
    %v88 = vsel %vm86, 1, 0
    %v89 = vsel %vm87, 1, 0
    %v90 = vcvt.s32.f32 %v88
    %v91 = vcvt.s32.f32 %v89
    %v92 = vld [vmem:[%s6] sm:$0xff]
    %v93 = vld [vmem:[%s6 + $0x8] sm:$0xff]
    %v94 = vld [vmem:[%s6 + $0x10] sm:$0xff]
    %v95 = vld [vmem:[%s6 + $0x18] sm:$0xff]
    %v96 = vld [vmem:[%s6 + $0x20] sm:$0xff]
    %v97 = vld [vmem:[%s6 + $0x28] sm:$0xff]
    %v98 = vld [vmem:[%s6 + $0x30] sm:$0x3]
    %v99 = vld [vmem:[%s2] sm:$0xff]
    %v100 = vld [vmem:[%s2 + $0x8] sm:$0xff]
    %101 = vset.pattern.permute.xlu0 0
    %102 = vperm.xlu0 %101, %v99
    %v103 = vpop.permute.xlu0 %102
    %104 = vset.pattern.permute.xlu0 0
    %105 = vperm.xlu0 %104, %v100
    %v106 = vpop.permute.xlu0 %105
    %vm107 = vcmp.eq.s32.totalorder %v77, %v103
    %vm108 = vcmp.eq.s32.totalorder %v77, %v106
    %v109 = vsel %vm107, 1, 0
    %v110 = vsel %vm108, 1, 0
    %v111 = vcvt.s32.f32 %v109
    %v112 = vcvt.s32.f32 %v110
    %v113 = vld [vmem:[%s7] sm:$0xff]
    %v114 = vld [vmem:[%s7 + $0x8] sm:$0xff]
    %vm115 = vcmask 130048
    %v117 = vsel %vm115, %v111, 0
    %v120 = vsel %vm115, %v112, 0
    %122 = vmatpush.msra.mxu0 0.0
    %123 = vmatpush.msra.mxu0 0.0
    %124 = vmatpush.msra.mxu0 0.0
    %125 = vmatpush.msra.mxu0 0.0
    %126 = vmatpush.msra.mxu0 0.0
    %127 = vmatpush.msra.mxu0 0.0
    %128 = vmatpush.msra.mxu0 0.0
    %129 = vmatpush.msra.mxu0 0.0
    %130 = vmatpush.msra.mxu0 0.0
    %131 = vmatpush.msra.mxu0 0.0
    %132 = vmatpush.msra.mxu0 0.0
    %133 = vmatpush.msra.mxu0 0.0
    %134 = vmatpush.msra.mxu0 0.0
    %135 = vmatpush.msra.mxu0 0.0
    %136 = vmatpush.msra.mxu0 %v114
    %137 = vmatpush.msra.mxu0 %v113
    %138 = vmatmul.f32.gmra.mxu0 %v117
    %v139 = vpop.f32.mrf.mxu0
    %v140 = vadd.f32 0.0, %v139
    %141 = vmatmul.f32.gmra.mxu0 %v120
    %v142 = vpop.f32.mrf.mxu0
    %v143 = vadd.f32 0.0, %v142
    %144 = vdwg.mxu0
    %vm145 = vcmask 408576
    %v147 = vsel %vm145, %v90, 0
    %v150 = vsel %vm145, %v91, 0
    %vm152 = vcmask 1041408
    %v154 = vsel %vm152, %v98, 0
    %156 = vmatpush.msra.mxu0 0.0
    %157 = vmatpush.msra.mxu0 0.0
    %158 = vmatpush.msra.mxu0 0.0
    %159 = vmatpush.msra.mxu0 0.0
    %160 = vmatpush.msra.mxu0 0.0
    %161 = vmatpush.msra.mxu0 0.0
    %162 = vmatpush.msra.mxu0 0.0
    %163 = vmatpush.msra.mxu0 0.0
    %164 = vmatpush.msra.mxu0 0.0
    %165 = vmatpush.msra.mxu0 %v154
    %166 = vmatpush.msra.mxu0 %v97
    %167 = vmatpush.msra.mxu0 %v96
    %168 = vmatpush.msra.mxu0 %v95
    %169 = vmatpush.msra.mxu0 %v94
    %170 = vmatpush.msra.mxu0 %v93
    %171 = vmatpush.msra.mxu0 %v92
    %172 = vmatmul.f32.gmra.mxu0 %v147
    %v173 = vpop.f32.mrf.mxu0
    %v174 = vadd.f32 %v140, %v173
    %175 = vmatmul.f32.gmra.mxu0 %v150
    %v176 = vpop.f32.mrf.mxu0
    %v177 = vadd.f32 %v143, %v176
    %178 = vdwg.mxu0
    %v179 = vld [vmem:[%s1] sm:$0xff]
    %v180 = vld [vmem:[%s1 + $0x8] sm:$0xff]
    %v181 = vcvt.s32.f32 %v179
    %v182 = vcvt.s32.f32 %v180
    %v183 = vld [vmem:[%s8] sm:$0x1]
    %v184 = vld [vmem:[%s8 + $0x1] sm:$0x1]
    %v185 = vsub.f32 %v184, %v183
    %187 = vset.pattern.permute.xlu0 0
    %188 = vperm.xlu0 %187, %v181
    %v189 = vpop.permute.xlu0 %188
    %192 = vset.pattern.permute.xlu0 0
    %193 = vperm.xlu0 %192, %v182
    %v194 = vpop.permute.xlu0 %193
    %v196 = vperm.slane %v185, 0
    %v197 = vmul.f32 %v189, %v196
    %v198 = vmul.f32 %v194, %v196
    %v199 = vperm.slane %v183, 0
    %v200 = vadd.f32 %v199, %v197
    %v201 = vadd.f32 %v199, %v198
    %v202 = vadd.f32 %v174, %v200
    %v203 = vadd.f32 %v177, %v201
    %v204 = vld [vmem:[%s9] sm:$0x1]
    %v205 = vld [vmem:[%s10] sm:$0x1]
    %vm206 = vcmask 261120
    %v207 = vsel %vm206, %v202, 0.0
    %208 = vadd.xlane.f32.xlu0 %v207
    %v209 = vpop.xlane.xlu0 %208
    %v210 = vsel %vm206, %v203, 0.0
    %211 = vadd.xlane.f32.xlu0 %v210
    %v212 = vpop.xlane.xlu0 %211
    %v213 = vrcp.pop 32.0
    %v214 = vmul.f32 32.0, %v213
    %v215 = vsub.f32 1.0, %v214
    %v216 = vmul.f32 %v213, %v215
    %v217 = vadd.f32 %v213, %v216
    %vm218 = vweird.f32 %v213
    %v219 = vsel %vm218, %v213, %v217
    %v220 = vmul.f32 %v209, %v219
    %v221 = vmul.f32 %v212, %v219
    %v222 = vsub.f32 %v202, %v220
    %v223 = vsub.f32 %v203, %v221
    %v224 = vmul.f32 %v222, %v222
    %v225 = vmul.f32 %v223, %v223
    %v226 = vsel %vm206, %v224, 0.0
    %227 = vadd.xlane.f32.xlu0 %v226
    %v228 = vpop.xlane.xlu0 %227
    %v229 = vsel %vm206, %v225, 0.0
    %230 = vadd.xlane.f32.xlu0 %v229
    %v231 = vpop.xlane.xlu0 %230
    %v232 = vmul.f32 %v228, %v219
    %v233 = vmul.f32 %v231, %v219
    %v234 = vadd.f32 %v232, 1e-12
    %v235 = vadd.f32 %v233, 1e-12
    %v236 = vrsqrt.pop %v234
    %v237 = vmul.f32 %v236, %v234
    %v238 = vmul.f32 %v237, %v236
    %v239 = vmul.f32 0.5, %v238
    %v240 = vsub.f32 1.5, %v239
    %v241 = vmul.f32 %v236, %v240
    %vm242 = vweird.f32 %v234
    %vm243 = vweird.f32 %v236
    %vm244 = vmor %vm242, %vm243
    %v245 = vsel %vm244, %v236, %v241
    %v246 = vrsqrt.pop %v235
    %v247 = vmul.f32 %v246, %v235
    %v248 = vmul.f32 %v247, %v246
    %v249 = vmul.f32 0.5, %v248
    %v250 = vsub.f32 1.5, %v249
    %v251 = vmul.f32 %v246, %v250
    %vm252 = vweird.f32 %v235
    %vm253 = vweird.f32 %v246
    %vm254 = vmor %vm252, %vm253
    %v255 = vsel %vm254, %v246, %v251
    %v256 = vmul.f32 %v222, %v245
    %v257 = vmul.f32 %v223, %v255
    %v259 = vperm.slane %v204, 0
    %v261 = vmul.f32 %v256, %v259
    %v262 = vmul.f32 %v257, %v259
    %v264 = vperm.slane %v205, 0
    %v266 = vadd.f32 %v261, %v264
    %v267 = vadd.f32 %v262, %v264
    %v268 = vld [vmem:[%s5] sm:$0x1]
    %v269 = vsub.f32 1.0, %v268
    %v270 = vmul.f32 %v269, -10000.0
    %v271 = vld [vmem:[%s3] sm:$0xff]
    %v272 = vld [vmem:[%s3 + $0x8] sm:$0xff]
    %v273 = vld [vmem:[%s4] sm:$0x1]
    %274 = vset.pattern.permute.xlu0 0
    %275 = vperm.xlu0 %274, %v271
    %v276 = vpop.permute.xlu0 %275
    %277 = vset.pattern.permute.xlu0 0
    %278 = vperm.xlu0 %277, %v272
    %v279 = vpop.permute.xlu0 %278
    %v280 = vperm.slane %v273, 0
    %vm281 = vcmp.eq.s32.totalorder %v276, %v280
    %vm282 = vcmp.eq.s32.totalorder %v279, %v280
    %v283 = vsel %vm281, 1, 0
    %v284 = vsel %vm282, 1, 0
    %v285 = vcvt.s32.f32 %v283
    %v286 = vcvt.s32.f32 %v284
    %v288 = vperm.slane %v270, 0
    %v290 = vmul.f32 %v285, %v288
    %v291 = vmul.f32 %v286, %v288
    %v292 = vsub.f32 1.0, %v285
    %v293 = vsub.f32 1.0, %v286
    %v294 = vmul.f32 %v292, -1e+09
    %v295 = vmul.f32 %v293, -1e+09
    %v296 = vadd.f32 %v290, %v294
    %v297 = vadd.f32 %v291, %v295
    %v298 = vpack.c.bf16 %v267, %v266
    %v299 = vld [vmem:[%s11] sm:$0xf]
    %v300 = vld [vmem:[%s11 + $0x4] sm:$0xf]
    %v301 = vld [vmem:[%s11 + $0x8] sm:$0xf]
    %v302 = vld [vmem:[%s11 + $0xc] sm:$0xf]
    %v303 = vld [vmem:[%s12] sm:$0x1]
    %v305 = vperm.slane %v303, 0
    %v311 = vunpack.c.l.b16 %v299
    %v312 = vunpack.c.l.b16 %v300
    %v313 = vunpack.c.l.b16 %v301
    %v314 = vunpack.c.l.b16 %v302
    %v315 = vpack.c.b16 %v312, %v311
    %v316 = vpack.c.b16 %v314, %v313
    %v320 = vsel %vm206, %v298, 0
    %322 = vmatpush.bf16.msra.mxu0 0
    %323 = vmatpush.bf16.msra.mxu0 0
    %324 = vmatpush.bf16.msra.mxu0 0
    %325 = vmatpush.bf16.msra.mxu0 0
    %326 = vmatpush.bf16.msra.mxu0 0
    %327 = vmatpush.bf16.msra.mxu0 0
    %328 = vmatpush.bf16.msra.mxu0 %v316
    %329 = vmatpush.bf16.msra.mxu0 %v315
    %330 = vmatmul.bf16.gmra.mxu0 %v320
    %v331 = vpop.f32.mrf.mxu0
    %v332 = vadd.f32 %v305, %v331
    %v333 = vpop.f32.mrf.mxu0
    %v334 = vadd.f32 %v305, %v333
    %335 = vdwg.mxu0
    %v336 = vpack.c.bf16 %v332, %v332
    %v337 = vpack.c.bf16 %v334, %v334
    %v340 = vunpack.c.l.b16 %v336
    %v341 = vunpack.c.l.b16 %v337
    %v342 = vpack.c.b16 %v341, %v340
    %343 = vrot.lane.b32.xlu0 %v342, 96
    %v344 = vpop.permute.xlu0 %343
    %v346 = vsel %vm115, %v342, 0
    %v349 = vsel %vm115, %v344, 0
    %351 = vmatpush.bf16.xpose.msra.mxu0 0
    %352 = vmatpush.bf16.xpose.msra.mxu0 0
    %353 = vmatpush.bf16.xpose.msra.mxu0 0
    %354 = vmatpush.bf16.xpose.msra.mxu0 0
    %355 = vmatpush.bf16.xpose.msra.mxu0 0
    %356 = vmatpush.bf16.xpose.msra.mxu0 0
    %357 = vmatpush.bf16.xpose.msra.mxu0 0
    %358 = vmatpush.bf16.xpose.msra.mxu0 %v349
    %359 = vmatmul.bf16.gmra.mxu0 %v346
    %v360 = vpop.f32.mrf.mxu0
    %v361 = vadd.f32 %v296, %v360
    %v362 = vpop.f32.mrf.mxu0
    %v363 = vadd.f32 %v297, %v362
    %364 = vdwg.mxu0
    %v365 = vsel %vm115, %v361, -inf
    %366 = vmax.xlane.f32.xlu0 %v365
    %v367 = vpop.xlane.xlu0 %366
    %v368 = vsel %vm115, %v363, -inf
    %369 = vmax.xlane.f32.xlu0 %v368
    %v370 = vpop.xlane.xlu0 %369
    %v371 = vsub.f32 %v361, %v367
    %v372 = vsub.f32 %v363, %v370
    %v373 = vmul.f32 %v371, 1.442695
    %v374 = vpow.pop %v373
    %v375 = vmul.f32 %v372, 1.442695
    %v376 = vpow.pop %v375
    %v377 = vsel %vm115, %v374, 0.0
    %378 = vadd.xlane.f32.xlu0 %v377
    %v379 = vpop.xlane.xlu0 %378
    %v380 = vsel %vm115, %v376, 0.0
    %381 = vadd.xlane.f32.xlu0 %v380
    %v382 = vpop.xlane.xlu0 %381
    %v383 = vrcp.pop %v379
    %v384 = vrcp.pop %v382
    %v385 = vmul.f32 %v374, %v383
    %v386 = vmul.f32 %v376, %v384
    %v387 = vpack.c.bf16 %v386, %v385
    %388 = vrot.lane.b32.xlu0 %v342, 64
    %v389 = vpop.permute.xlu0 %388
    %v392 = vsel %vm115, %v387, 0
    %394 = vmatpush.bf16.msra.mxu0 0
    %395 = vmatpush.bf16.msra.mxu0 0
    %396 = vmatpush.bf16.msra.mxu0 0
    %397 = vmatpush.bf16.msra.mxu0 0
    %398 = vmatpush.bf16.msra.mxu0 0
    %399 = vmatpush.bf16.msra.mxu0 0
    %400 = vmatpush.bf16.msra.mxu0 0
    %401 = vmatpush.bf16.msra.mxu0 %v389
    %402 = vmatmul.bf16.gmra.mxu0 %v392
    %v403 = vpop.f32.mrf.mxu0
    %v404 = vadd.f32 0.0, %v403
    %v405 = vpop.f32.mrf.mxu0
    %v406 = vadd.f32 0.0, %v405
    %407 = vdwg.mxu0
    %408 = vrot.lane.b32.xlu0 %v342, 112
    %v409 = vpop.permute.xlu0 %408
    %410 = vrot.lane.b32.xlu0 %v342, 80
    %v411 = vpop.permute.xlu0 %410
    %v413 = vsel %vm115, %v409, 0
    %v416 = vsel %vm115, %v411, 0
    %418 = vmatpush.bf16.xpose.msra.mxu0 0
    %419 = vmatpush.bf16.xpose.msra.mxu0 0
    %420 = vmatpush.bf16.xpose.msra.mxu0 0
    %421 = vmatpush.bf16.xpose.msra.mxu0 0
    %422 = vmatpush.bf16.xpose.msra.mxu0 0
    %423 = vmatpush.bf16.xpose.msra.mxu0 0
    %424 = vmatpush.bf16.xpose.msra.mxu0 0
    %425 = vmatpush.bf16.xpose.msra.mxu0 %v416
    %426 = vmatmul.bf16.gmra.mxu0 %v413
    %v427 = vpop.f32.mrf.mxu0
    %v428 = vadd.f32 %v296, %v427
    %v429 = vpop.f32.mrf.mxu0
    %v430 = vadd.f32 %v297, %v429
    %431 = vdwg.mxu0
    %v432 = vsel %vm115, %v428, -inf
    %433 = vmax.xlane.f32.xlu0 %v432
    %v434 = vpop.xlane.xlu0 %433
    %v435 = vsel %vm115, %v430, -inf
    %436 = vmax.xlane.f32.xlu0 %v435
    %v437 = vpop.xlane.xlu0 %436
    %v438 = vsub.f32 %v428, %v434
    %v439 = vsub.f32 %v430, %v437
    %v440 = vmul.f32 %v438, 1.442695
    %v441 = vpow.pop %v440
    %v442 = vmul.f32 %v439, 1.442695
    %v443 = vpow.pop %v442
    %v444 = vsel %vm115, %v441, 0.0
    %445 = vadd.xlane.f32.xlu0 %v444
    %v446 = vpop.xlane.xlu0 %445
    %v447 = vsel %vm115, %v443, 0.0
    %448 = vadd.xlane.f32.xlu0 %v447
    %v449 = vpop.xlane.xlu0 %448
    %v450 = vrcp.pop %v446
    %v451 = vrcp.pop %v449
    %v452 = vmul.f32 %v441, %v450
    %v453 = vmul.f32 %v443, %v451
    %v454 = vpack.c.bf16 %v453, %v452
    %455 = vrot.lane.b32.xlu0 %v342, 48
    %v456 = vpop.permute.xlu0 %455
    %v459 = vsel %vm115, %v454, 0
    %461 = vmatpush.bf16.msra.mxu0 0
    %462 = vmatpush.bf16.msra.mxu0 0
    %463 = vmatpush.bf16.msra.mxu0 0
    %464 = vmatpush.bf16.msra.mxu0 0
    %465 = vmatpush.bf16.msra.mxu0 0
    %466 = vmatpush.bf16.msra.mxu0 0
    %467 = vmatpush.bf16.msra.mxu0 0
    %468 = vmatpush.bf16.msra.mxu0 %v456
    %469 = vmatmul.bf16.gmra.mxu0 %v459
    %v470 = vpop.f32.mrf.mxu0
    %v471 = vadd.f32 0.0, %v470
    %v472 = vpop.f32.mrf.mxu0
    %v473 = vadd.f32 0.0, %v472
    %474 = vdwg.mxu0
    %477 = vrot.lane.b32.xlu0 %v471, 16
    %v478 = vpop.permute.xlu0 %477
    %479 = vrot.lane.b32.xlu0 %v473, 16
    %v480 = vpop.permute.xlu0 %479
    %v483 = vsel %vm115, %v404, %v478
    %v484 = vsel %vm115, %v406, %v480
    %v485 = vpack.c.bf16 %v484, %v483
    %v486 = vld [vmem:[%s13] sm:$0xf]
    %v487 = vld [vmem:[%s13 + $0x4] sm:$0xf]
    %v488 = vld [vmem:[%s13 + $0x8] sm:$0xf]
    %v489 = vld [vmem:[%s13 + $0xc] sm:$0xf]
    %v490 = vld [vmem:[%s14] sm:$0x1]
    %v492 = vperm.slane %v490, 0
    %v498 = vunpack.c.l.b16 %v486
    %v499 = vunpack.c.l.b16 %v487
    %v500 = vunpack.c.l.b16 %v488
    %v501 = vunpack.c.l.b16 %v489
    %v502 = vpack.c.b16 %v499, %v498
    %v503 = vpack.c.b16 %v501, %v500
    %v507 = vsel %vm206, %v485, 0
    %509 = vmatpush.bf16.msra.mxu0 0
    %510 = vmatpush.bf16.msra.mxu0 0
    %511 = vmatpush.bf16.msra.mxu0 0
    %512 = vmatpush.bf16.msra.mxu0 0
    %513 = vmatpush.bf16.msra.mxu0 0
    %514 = vmatpush.bf16.msra.mxu0 0
    %515 = vmatpush.bf16.msra.mxu0 %v503
    %516 = vmatpush.bf16.msra.mxu0 %v502
    %517 = vmatmul.bf16.gmra.mxu0 %v507
    %v518 = vpop.f32.mrf.mxu0
    %v519 = vadd.f32 %v492, %v518
    %v520 = vpop.f32.mrf.mxu0
    %v521 = vadd.f32 %v492, %v520
    %522 = vdwg.mxu0
    %v523 = vadd.f32 %v519, %v266
    %v524 = vadd.f32 %v521, %v267
    %v525 = vld [vmem:[%s15] sm:$0x1]
    %v526 = vld [vmem:[%s16] sm:$0x1]
    %v527 = vsel %vm206, %v523, 0.0
    %528 = vadd.xlane.f32.xlu0 %v527
    %v529 = vpop.xlane.xlu0 %528
    %v530 = vsel %vm206, %v524, 0.0
    %531 = vadd.xlane.f32.xlu0 %v530
    %v532 = vpop.xlane.xlu0 %531
    %v533 = vmul.f32 %v529, %v219
    %v534 = vmul.f32 %v532, %v219
    %v535 = vsub.f32 %v523, %v533
    %v536 = vsub.f32 %v524, %v534
    %v537 = vmul.f32 %v535, %v535
    %v538 = vmul.f32 %v536, %v536
    %v539 = vsel %vm206, %v537, 0.0
    %540 = vadd.xlane.f32.xlu0 %v539
    %v541 = vpop.xlane.xlu0 %540
    %v542 = vsel %vm206, %v538, 0.0
    %543 = vadd.xlane.f32.xlu0 %v542
    %v544 = vpop.xlane.xlu0 %543
    %v545 = vmul.f32 %v541, %v219
    %v546 = vmul.f32 %v544, %v219
    %v547 = vadd.f32 %v545, 1e-12
    %v548 = vadd.f32 %v546, 1e-12
    %v549 = vrsqrt.pop %v547
    %v550 = vmul.f32 %v549, %v547
    %v551 = vmul.f32 %v550, %v549
    %v552 = vmul.f32 0.5, %v551
    %v553 = vsub.f32 1.5, %v552
    %v554 = vmul.f32 %v549, %v553
    %vm555 = vweird.f32 %v547
    %vm556 = vweird.f32 %v549
    %vm557 = vmor %vm555, %vm556
    %v558 = vsel %vm557, %v549, %v554
    %v559 = vrsqrt.pop %v548
    %v560 = vmul.f32 %v559, %v548
    %v561 = vmul.f32 %v560, %v559
    %v562 = vmul.f32 0.5, %v561
    %v563 = vsub.f32 1.5, %v562
    %v564 = vmul.f32 %v559, %v563
    %vm565 = vweird.f32 %v548
    %vm566 = vweird.f32 %v559
    %vm567 = vmor %vm565, %vm566
    %v568 = vsel %vm567, %v559, %v564
    %v569 = vmul.f32 %v535, %v558
    %v570 = vmul.f32 %v536, %v568
    %v572 = vperm.slane %v525, 0
    %v574 = vmul.f32 %v569, %v572
    %v575 = vmul.f32 %v570, %v572
    %v577 = vperm.slane %v526, 0
    %v579 = vadd.f32 %v574, %v577
    %v580 = vadd.f32 %v575, %v577
    %v581 = vpack.c.bf16 %v580, %v579
    %v582 = vld [vmem:[%s17] sm:$0xf]
    %v583 = vld [vmem:[%s17 + $0x4] sm:$0xf]
    %v584 = vld [vmem:[%s17 + $0x8] sm:$0xf]
    %v585 = vld [vmem:[%s17 + $0xc] sm:$0xf]
    %v586 = vld [vmem:[%s18] sm:$0x1]
    %v588 = vperm.slane %v586, 0
    %v594 = vunpack.c.l.b16 %v582
    %v595 = vunpack.c.l.b16 %v583
    %v596 = vunpack.c.l.b16 %v584
    %v597 = vunpack.c.l.b16 %v585
    %v598 = vpack.c.b16 %v595, %v594
    %v599 = vpack.c.b16 %v597, %v596
    %v603 = vsel %vm206, %v581, 0
    %605 = vmatpush.bf16.msra.mxu0 0
    %606 = vmatpush.bf16.msra.mxu0 0
    %607 = vmatpush.bf16.msra.mxu0 0
    %608 = vmatpush.bf16.msra.mxu0 0
    %609 = vmatpush.bf16.msra.mxu0 0
    %610 = vmatpush.bf16.msra.mxu0 0
    %611 = vmatpush.bf16.msra.mxu0 %v599
    %612 = vmatpush.bf16.msra.mxu0 %v598
    %613 = vmatmul.bf16.gmra.mxu0 %v603
    %v614 = vpop.f32.mrf.mxu0
    %v615 = vadd.f32 %v588, %v614
    %v616 = vpop.f32.mrf.mxu0
    %v617 = vadd.f32 %v588, %v616
    %618 = vdwg.mxu0
    %v619 = vmul.f32 %v615, %v615
    %v620 = vmul.f32 %v617, %v617
    %v621 = vmul.f32 %v615, %v619
    %v622 = vmul.f32 %v617, %v620
    %v623 = vmul.f32 %v621, 0.044715
    %v624 = vmul.f32 %v622, 0.044715
    %v625 = vadd.f32 %v615, %v623
    %v626 = vadd.f32 %v617, %v624
    %v627 = vmul.f32 %v625, 0.7978846
    %v628 = vmul.f32 %v626, 0.7978846
    %v629 = vtanh.pop %v627
    %v630 = vtanh.pop %v628
    %v631 = vadd.f32 %v629, 1.0
    %v632 = vadd.f32 %v630, 1.0
    %v633 = vmul.f32 %v631, 0.5
    %v634 = vmul.f32 %v632, 0.5
    %v635 = vmul.f32 %v615, %v633
    %v636 = vmul.f32 %v617, %v634
    %v637 = vpack.c.bf16 %v636, %v635
    %v638 = vld [vmem:[%s19] sm:$0xf]
    %v639 = vld [vmem:[%s19 + $0x4] sm:$0xf]
    %v640 = vld [vmem:[%s19 + $0x8] sm:$0xf]
    %v641 = vld [vmem:[%s19 + $0xc] sm:$0xf]
    %v642 = vld [vmem:[%s19 + $0x10] sm:$0xf]
    %v643 = vld [vmem:[%s19 + $0x14] sm:$0xf]
    %v644 = vld [vmem:[%s19 + $0x18] sm:$0xf]
    %v645 = vld [vmem:[%s19 + $0x1c] sm:$0xf]
    %v646 = vld [vmem:[%s20] sm:$0x1]
    %v648 = vperm.slane %v646, 0
    %v658 = vunpack.c.l.b16 %v638
    %v659 = vunpack.c.l.b16 %v639
    %v660 = vunpack.c.l.b16 %v640
    %v661 = vunpack.c.l.b16 %v641
    %v662 = vunpack.c.l.b16 %v642
    %v663 = vunpack.c.l.b16 %v643
    %v664 = vunpack.c.l.b16 %v644
    %v665 = vunpack.c.l.b16 %v645
    %v666 = vpack.c.b16 %v659, %v658
    %v667 = vpack.c.b16 %v661, %v660
    %v668 = vpack.c.b16 %v663, %v662
    %v669 = vpack.c.b16 %v665, %v664
    %vm674 = vcmask 523264
    %v676 = vsel %vm674, %v637, 0
    %678 = vmatpush.bf16.msra.mxu0 0
    %679 = vmatpush.bf16.msra.mxu0 0
    %680 = vmatpush.bf16.msra.mxu0 0
    %681 = vmatpush.bf16.msra.mxu0 0
    %682 = vmatpush.bf16.msra.mxu0 %v669
    %683 = vmatpush.bf16.msra.mxu0 %v668
    %684 = vmatpush.bf16.msra.mxu0 %v667
    %685 = vmatpush.bf16.msra.mxu0 %v666
    %686 = vmatmul.bf16.gmra.mxu0 %v676
    %v687 = vpop.f32.mrf.mxu0
    %v688 = vadd.f32 %v648, %v687
    %v689 = vpop.f32.mrf.mxu0
    %v690 = vadd.f32 %v648, %v689
    %691 = vdwg.mxu0
    %v692 = vadd.f32 %v688, %v579
    %v693 = vadd.f32 %v690, %v580
    %v694 = vld [vmem:[%s21] sm:$0x1]
    %v695 = vld [vmem:[%s22] sm:$0x1]
    %v696 = vsel %vm206, %v692, 0.0
    %697 = vadd.xlane.f32.xlu0 %v696
    %v698 = vpop.xlane.xlu0 %697
    %v699 = vsel %vm206, %v693, 0.0
    %700 = vadd.xlane.f32.xlu0 %v699
    %v701 = vpop.xlane.xlu0 %700
    %v702 = vmul.f32 %v698, %v219
    %v703 = vmul.f32 %v701, %v219
    %v704 = vsub.f32 %v692, %v702
    %v705 = vsub.f32 %v693, %v703
    %v706 = vmul.f32 %v704, %v704
    %v707 = vmul.f32 %v705, %v705
    %v708 = vsel %vm206, %v706, 0.0
    %709 = vadd.xlane.f32.xlu0 %v708
    %v710 = vpop.xlane.xlu0 %709
    %v711 = vsel %vm206, %v707, 0.0
    %712 = vadd.xlane.f32.xlu0 %v711
    %v713 = vpop.xlane.xlu0 %712
    %v714 = vmul.f32 %v710, %v219
    %v715 = vmul.f32 %v713, %v219
    %v716 = vadd.f32 %v714, 1e-12
    %v717 = vadd.f32 %v715, 1e-12
    %v718 = vrsqrt.pop %v716
    %v719 = vmul.f32 %v718, %v716
    %v720 = vmul.f32 %v719, %v718
    %v721 = vmul.f32 0.5, %v720
    %v722 = vsub.f32 1.5, %v721
    %v723 = vmul.f32 %v718, %v722
    %vm724 = vweird.f32 %v716
    %vm725 = vweird.f32 %v718
    %vm726 = vmor %vm724, %vm725
    %v727 = vsel %vm726, %v718, %v723
    %v728 = vrsqrt.pop %v717
    %v729 = vmul.f32 %v728, %v717
    %v730 = vmul.f32 %v729, %v728
    %v731 = vmul.f32 0.5, %v730
    %v732 = vsub.f32 1.5, %v731
    %v733 = vmul.f32 %v728, %v732
    %vm734 = vweird.f32 %v717
    %vm735 = vweird.f32 %v728
    %vm736 = vmor %vm734, %vm735
    %v737 = vsel %vm736, %v728, %v733
    %v738 = vmul.f32 %v704, %v727
    %v739 = vmul.f32 %v705, %v737
    %v741 = vperm.slane %v694, 0
    %v743 = vmul.f32 %v738, %v741
    %v744 = vmul.f32 %v739, %v741
    %v746 = vperm.slane %v695, 0
    %v748 = vadd.f32 %v743, %v746
    %v749 = vadd.f32 %v744, %v746
    %v750 = vpack.c.bf16 %v749, %v748
    %s751 = scalar_lea.vmem %s11, 16
    %v752 = vld [vmem:[%s751] sm:$0xf]
    %v753 = vld [vmem:[%s751 + $0x4] sm:$0xf]
    %v754 = vld [vmem:[%s751 + $0x8] sm:$0xf]
    %v755 = vld [vmem:[%s751 + $0xc] sm:$0xf]
    %s756 = scalar_lea.vmem %s12, 1
    %v757 = vld [vmem:[%s756] sm:$0x1]
    %v759 = vperm.slane %v757, 0
    %v765 = vunpack.c.l.b16 %v752
    %v766 = vunpack.c.l.b16 %v753
    %v767 = vunpack.c.l.b16 %v754
    %v768 = vunpack.c.l.b16 %v755
    %v769 = vpack.c.b16 %v766, %v765
    %v770 = vpack.c.b16 %v768, %v767
    %v774 = vsel %vm206, %v750, 0
    %776 = vmatpush.bf16.msra.mxu0 0
    %777 = vmatpush.bf16.msra.mxu0 0
    %778 = vmatpush.bf16.msra.mxu0 0
    %779 = vmatpush.bf16.msra.mxu0 0
    %780 = vmatpush.bf16.msra.mxu0 0
    %781 = vmatpush.bf16.msra.mxu0 0
    %782 = vmatpush.bf16.msra.mxu0 %v770
    %783 = vmatpush.bf16.msra.mxu0 %v769
    %784 = vmatmul.bf16.gmra.mxu0 %v774
    %v785 = vpop.f32.mrf.mxu0
    %v786 = vadd.f32 %v759, %v785
    %v787 = vpop.f32.mrf.mxu0
    %v788 = vadd.f32 %v759, %v787
    %789 = vdwg.mxu0
    %v790 = vpack.c.bf16 %v786, %v786
    %v791 = vpack.c.bf16 %v788, %v788
    %v794 = vunpack.c.l.b16 %v790
    %v795 = vunpack.c.l.b16 %v791
    %v796 = vpack.c.b16 %v795, %v794
    %797 = vrot.lane.b32.xlu0 %v796, 96
    %v798 = vpop.permute.xlu0 %797
    %v800 = vsel %vm115, %v796, 0
    %v803 = vsel %vm115, %v798, 0
    %805 = vmatpush.bf16.xpose.msra.mxu0 0
    %806 = vmatpush.bf16.xpose.msra.mxu0 0
    %807 = vmatpush.bf16.xpose.msra.mxu0 0
    %808 = vmatpush.bf16.xpose.msra.mxu0 0
    %809 = vmatpush.bf16.xpose.msra.mxu0 0
    %810 = vmatpush.bf16.xpose.msra.mxu0 0
    %811 = vmatpush.bf16.xpose.msra.mxu0 0
    %812 = vmatpush.bf16.xpose.msra.mxu0 %v803
    %813 = vmatmul.bf16.gmra.mxu0 %v800
    %v814 = vpop.f32.mrf.mxu0
    %v815 = vadd.f32 %v296, %v814
    %v816 = vpop.f32.mrf.mxu0
    %v817 = vadd.f32 %v297, %v816
    %818 = vdwg.mxu0
    %v819 = vsel %vm115, %v815, -inf
    %820 = vmax.xlane.f32.xlu0 %v819
    %v821 = vpop.xlane.xlu0 %820
    %v822 = vsel %vm115, %v817, -inf
    %823 = vmax.xlane.f32.xlu0 %v822
    %v824 = vpop.xlane.xlu0 %823
    %v825 = vsub.f32 %v815, %v821
    %v826 = vsub.f32 %v817, %v824
    %v827 = vmul.f32 %v825, 1.442695
    %v828 = vpow.pop %v827
    %v829 = vmul.f32 %v826, 1.442695
    %v830 = vpow.pop %v829
    %v831 = vsel %vm115, %v828, 0.0
    %832 = vadd.xlane.f32.xlu0 %v831
    %v833 = vpop.xlane.xlu0 %832
    %v834 = vsel %vm115, %v830, 0.0
    %835 = vadd.xlane.f32.xlu0 %v834
    %v836 = vpop.xlane.xlu0 %835
    %v837 = vrcp.pop %v833
    %v838 = vrcp.pop %v836
    %v839 = vmul.f32 %v828, %v837
    %v840 = vmul.f32 %v830, %v838
    %v841 = vpack.c.bf16 %v840, %v839
    %842 = vrot.lane.b32.xlu0 %v796, 64
    %v843 = vpop.permute.xlu0 %842
    %v846 = vsel %vm115, %v841, 0
    %848 = vmatpush.bf16.msra.mxu0 0
    %849 = vmatpush.bf16.msra.mxu0 0
    %850 = vmatpush.bf16.msra.mxu0 0
    %851 = vmatpush.bf16.msra.mxu0 0
    %852 = vmatpush.bf16.msra.mxu0 0
    %853 = vmatpush.bf16.msra.mxu0 0
    %854 = vmatpush.bf16.msra.mxu0 0
    %855 = vmatpush.bf16.msra.mxu0 %v843
    %856 = vmatmul.bf16.gmra.mxu0 %v846
    %v857 = vpop.f32.mrf.mxu0
    %v858 = vadd.f32 0.0, %v857
    %v859 = vpop.f32.mrf.mxu0
    %v860 = vadd.f32 0.0, %v859
    %861 = vdwg.mxu0
    %862 = vrot.lane.b32.xlu0 %v796, 112
    %v863 = vpop.permute.xlu0 %862
    %864 = vrot.lane.b32.xlu0 %v796, 80
    %v865 = vpop.permute.xlu0 %864
    %v867 = vsel %vm115, %v863, 0
    %v870 = vsel %vm115, %v865, 0
    %872 = vmatpush.bf16.xpose.msra.mxu0 0
    %873 = vmatpush.bf16.xpose.msra.mxu0 0
    %874 = vmatpush.bf16.xpose.msra.mxu0 0
    %875 = vmatpush.bf16.xpose.msra.mxu0 0
    %876 = vmatpush.bf16.xpose.msra.mxu0 0
    %877 = vmatpush.bf16.xpose.msra.mxu0 0
    %878 = vmatpush.bf16.xpose.msra.mxu0 0
    %879 = vmatpush.bf16.xpose.msra.mxu0 %v870
    %880 = vmatmul.bf16.gmra.mxu0 %v867
    %v881 = vpop.f32.mrf.mxu0
    %v882 = vadd.f32 %v296, %v881
    %v883 = vpop.f32.mrf.mxu0
    %v884 = vadd.f32 %v297, %v883
    %885 = vdwg.mxu0
    %v886 = vsel %vm115, %v882, -inf
    %887 = vmax.xlane.f32.xlu0 %v886
    %v888 = vpop.xlane.xlu0 %887
    %v889 = vsel %vm115, %v884, -inf
    %890 = vmax.xlane.f32.xlu0 %v889
    %v891 = vpop.xlane.xlu0 %890
    %v892 = vsub.f32 %v882, %v888
    %v893 = vsub.f32 %v884, %v891
    %v894 = vmul.f32 %v892, 1.442695
    %v895 = vpow.pop %v894
    %v896 = vmul.f32 %v893, 1.442695
    %v897 = vpow.pop %v896
    %v898 = vsel %vm115, %v895, 0.0
    %899 = vadd.xlane.f32.xlu0 %v898
    %v900 = vpop.xlane.xlu0 %899
    %v901 = vsel %vm115, %v897, 0.0
    %902 = vadd.xlane.f32.xlu0 %v901
    %v903 = vpop.xlane.xlu0 %902
    %v904 = vrcp.pop %v900
    %v905 = vrcp.pop %v903
    %v906 = vmul.f32 %v895, %v904
    %v907 = vmul.f32 %v897, %v905
    %v908 = vpack.c.bf16 %v907, %v906
    %909 = vrot.lane.b32.xlu0 %v796, 48
    %v910 = vpop.permute.xlu0 %909
    %v913 = vsel %vm115, %v908, 0
    %915 = vmatpush.bf16.msra.mxu0 0
    %916 = vmatpush.bf16.msra.mxu0 0
    %917 = vmatpush.bf16.msra.mxu0 0
    %918 = vmatpush.bf16.msra.mxu0 0
    %919 = vmatpush.bf16.msra.mxu0 0
    %920 = vmatpush.bf16.msra.mxu0 0
    %921 = vmatpush.bf16.msra.mxu0 0
    %922 = vmatpush.bf16.msra.mxu0 %v910
    %923 = vmatmul.bf16.gmra.mxu0 %v913
    %v924 = vpop.f32.mrf.mxu0
    %v925 = vadd.f32 0.0, %v924
    %v926 = vpop.f32.mrf.mxu0
    %v927 = vadd.f32 0.0, %v926
    %928 = vdwg.mxu0
    %931 = vrot.lane.b32.xlu0 %v925, 16
    %v932 = vpop.permute.xlu0 %931
    %933 = vrot.lane.b32.xlu0 %v927, 16
    %v934 = vpop.permute.xlu0 %933
    %v937 = vsel %vm115, %v858, %v932
    %v938 = vsel %vm115, %v860, %v934
    %v939 = vpack.c.bf16 %v938, %v937
    %s940 = scalar_lea.vmem %s13, 16
    %v941 = vld [vmem:[%s940] sm:$0xf]
    %v942 = vld [vmem:[%s940 + $0x4] sm:$0xf]
    %v943 = vld [vmem:[%s940 + $0x8] sm:$0xf]
    %v944 = vld [vmem:[%s940 + $0xc] sm:$0xf]
    %s945 = scalar_lea.vmem %s14, 1
    %v946 = vld [vmem:[%s945] sm:$0x1]
    %v948 = vperm.slane %v946, 0
    %v954 = vunpack.c.l.b16 %v941
    %v955 = vunpack.c.l.b16 %v942
    %v956 = vunpack.c.l.b16 %v943
    %v957 = vunpack.c.l.b16 %v944
    %v958 = vpack.c.b16 %v955, %v954
    %v959 = vpack.c.b16 %v957, %v956
    %v963 = vsel %vm206, %v939, 0
    %965 = vmatpush.bf16.msra.mxu0 0
    %966 = vmatpush.bf16.msra.mxu0 0
    %967 = vmatpush.bf16.msra.mxu0 0
    %968 = vmatpush.bf16.msra.mxu0 0
    %969 = vmatpush.bf16.msra.mxu0 0
    %970 = vmatpush.bf16.msra.mxu0 0
    %971 = vmatpush.bf16.msra.mxu0 %v959
    %972 = vmatpush.bf16.msra.mxu0 %v958
    %973 = vmatmul.bf16.gmra.mxu0 %v963
    %v974 = vpop.f32.mrf.mxu0
    %v975 = vadd.f32 %v948, %v974
    %v976 = vpop.f32.mrf.mxu0
    %v977 = vadd.f32 %v948, %v976
    %978 = vdwg.mxu0
    %v979 = vadd.f32 %v975, %v748
    %v980 = vadd.f32 %v977, %v749
    %s981 = scalar_lea.vmem %s15, 1
    %v982 = vld [vmem:[%s981] sm:$0x1]
    %s983 = scalar_lea.vmem %s16, 1
    %v984 = vld [vmem:[%s983] sm:$0x1]
    %v985 = vsel %vm206, %v979, 0.0
    %986 = vadd.xlane.f32.xlu0 %v985
    %v987 = vpop.xlane.xlu0 %986
    %v988 = vsel %vm206, %v980, 0.0
    %989 = vadd.xlane.f32.xlu0 %v988
    %v990 = vpop.xlane.xlu0 %989
    %v991 = vmul.f32 %v987, %v219
    %v992 = vmul.f32 %v990, %v219
    %v993 = vsub.f32 %v979, %v991
    %v994 = vsub.f32 %v980, %v992
    %v995 = vmul.f32 %v993, %v993
    %v996 = vmul.f32 %v994, %v994
    %v997 = vsel %vm206, %v995, 0.0
    %998 = vadd.xlane.f32.xlu0 %v997
    %v999 = vpop.xlane.xlu0 %998
    %v1000 = vsel %vm206, %v996, 0.0
    %1001 = vadd.xlane.f32.xlu0 %v1000
    %v1002 = vpop.xlane.xlu0 %1001
    %v1003 = vmul.f32 %v999, %v219
    %v1004 = vmul.f32 %v1002, %v219
    %v1005 = vadd.f32 %v1003, 1e-12
    %v1006 = vadd.f32 %v1004, 1e-12
    %v1007 = vrsqrt.pop %v1005
    %v1008 = vmul.f32 %v1007, %v1005
    %v1009 = vmul.f32 %v1008, %v1007
    %v1010 = vmul.f32 0.5, %v1009
    %v1011 = vsub.f32 1.5, %v1010
    %v1012 = vmul.f32 %v1007, %v1011
    %vm1013 = vweird.f32 %v1005
    %vm1014 = vweird.f32 %v1007
    %vm1015 = vmor %vm1013, %vm1014
    %v1016 = vsel %vm1015, %v1007, %v1012
    %v1017 = vrsqrt.pop %v1006
    %v1018 = vmul.f32 %v1017, %v1006
    %v1019 = vmul.f32 %v1018, %v1017
    %v1020 = vmul.f32 0.5, %v1019
    %v1021 = vsub.f32 1.5, %v1020
    %v1022 = vmul.f32 %v1017, %v1021
    %vm1023 = vweird.f32 %v1006
    %vm1024 = vweird.f32 %v1017
    %vm1025 = vmor %vm1023, %vm1024
    %v1026 = vsel %vm1025, %v1017, %v1022
    %v1027 = vmul.f32 %v993, %v1016
    %v1028 = vmul.f32 %v994, %v1026
    %v1030 = vperm.slane %v982, 0
    %v1032 = vmul.f32 %v1027, %v1030
    %v1033 = vmul.f32 %v1028, %v1030
    %v1035 = vperm.slane %v984, 0
    %v1037 = vadd.f32 %v1032, %v1035
    %v1038 = vadd.f32 %v1033, %v1035
    %v1039 = vpack.c.bf16 %v1038, %v1037
    %s1040 = scalar_lea.vmem %s17, 16
    %v1041 = vld [vmem:[%s1040] sm:$0xf]
    %v1042 = vld [vmem:[%s1040 + $0x4] sm:$0xf]
    %v1043 = vld [vmem:[%s1040 + $0x8] sm:$0xf]
    %v1044 = vld [vmem:[%s1040 + $0xc] sm:$0xf]
    %s1045 = scalar_lea.vmem %s18, 1
    %v1046 = vld [vmem:[%s1045] sm:$0x1]
    %v1048 = vperm.slane %v1046, 0
    %v1054 = vunpack.c.l.b16 %v1041
    %v1055 = vunpack.c.l.b16 %v1042
    %v1056 = vunpack.c.l.b16 %v1043
    %v1057 = vunpack.c.l.b16 %v1044
    %v1058 = vpack.c.b16 %v1055, %v1054
    %v1059 = vpack.c.b16 %v1057, %v1056
    %v1063 = vsel %vm206, %v1039, 0
    %1065 = vmatpush.bf16.msra.mxu0 0
    %1066 = vmatpush.bf16.msra.mxu0 0
    %1067 = vmatpush.bf16.msra.mxu0 0
    %1068 = vmatpush.bf16.msra.mxu0 0
    %1069 = vmatpush.bf16.msra.mxu0 0
    %1070 = vmatpush.bf16.msra.mxu0 0
    %1071 = vmatpush.bf16.msra.mxu0 %v1059
    %1072 = vmatpush.bf16.msra.mxu0 %v1058
    %1073 = vmatmul.bf16.gmra.mxu0 %v1063
    %v1074 = vpop.f32.mrf.mxu0
    %v1075 = vadd.f32 %v1048, %v1074
    %v1076 = vpop.f32.mrf.mxu0
    %v1077 = vadd.f32 %v1048, %v1076
    %1078 = vdwg.mxu0
    %v1079 = vmul.f32 %v1075, %v1075
    %v1080 = vmul.f32 %v1077, %v1077
    %v1081 = vmul.f32 %v1075, %v1079
    %v1082 = vmul.f32 %v1077, %v1080
    %v1083 = vmul.f32 %v1081, 0.044715
    %v1084 = vmul.f32 %v1082, 0.044715
    %v1085 = vadd.f32 %v1075, %v1083
    %v1086 = vadd.f32 %v1077, %v1084
    %v1087 = vmul.f32 %v1085, 0.7978846
    %v1088 = vmul.f32 %v1086, 0.7978846
    %v1089 = vtanh.pop %v1087
    %v1090 = vtanh.pop %v1088
    %v1091 = vadd.f32 %v1089, 1.0
    %v1092 = vadd.f32 %v1090, 1.0
    %v1093 = vmul.f32 %v1091, 0.5
    %v1094 = vmul.f32 %v1092, 0.5
    %v1095 = vmul.f32 %v1075, %v1093
    %v1096 = vmul.f32 %v1077, %v1094
    %v1097 = vpack.c.bf16 %v1096, %v1095
    %s1098 = scalar_lea.vmem %s19, 32
    %v1099 = vld [vmem:[%s1098] sm:$0xf]
    %v1100 = vld [vmem:[%s1098 + $0x4] sm:$0xf]
    %v1101 = vld [vmem:[%s1098 + $0x8] sm:$0xf]
    %v1102 = vld [vmem:[%s1098 + $0xc] sm:$0xf]
    %v1103 = vld [vmem:[%s1098 + $0x10] sm:$0xf]
    %v1104 = vld [vmem:[%s1098 + $0x14] sm:$0xf]
    %v1105 = vld [vmem:[%s1098 + $0x18] sm:$0xf]
    %v1106 = vld [vmem:[%s1098 + $0x1c] sm:$0xf]
    %s1107 = scalar_lea.vmem %s20, 1
    %v1108 = vld [vmem:[%s1107] sm:$0x1]
    %v1110 = vperm.slane %v1108, 0
    %v1120 = vunpack.c.l.b16 %v1099
    %v1121 = vunpack.c.l.b16 %v1100
    %v1122 = vunpack.c.l.b16 %v1101
    %v1123 = vunpack.c.l.b16 %v1102
    %v1124 = vunpack.c.l.b16 %v1103
    %v1125 = vunpack.c.l.b16 %v1104
    %v1126 = vunpack.c.l.b16 %v1105
    %v1127 = vunpack.c.l.b16 %v1106
    %v1128 = vpack.c.b16 %v1121, %v1120
    %v1129 = vpack.c.b16 %v1123, %v1122
    %v1130 = vpack.c.b16 %v1125, %v1124
    %v1131 = vpack.c.b16 %v1127, %v1126
    %v1137 = vsel %vm674, %v1097, 0
    %1139 = vmatpush.bf16.msra.mxu0 0
    %1140 = vmatpush.bf16.msra.mxu0 0
    %1141 = vmatpush.bf16.msra.mxu0 0
    %1142 = vmatpush.bf16.msra.mxu0 0
    %1143 = vmatpush.bf16.msra.mxu0 %v1131
    %1144 = vmatpush.bf16.msra.mxu0 %v1130
    %1145 = vmatpush.bf16.msra.mxu0 %v1129
    %1146 = vmatpush.bf16.msra.mxu0 %v1128
    %1147 = vmatmul.bf16.gmra.mxu0 %v1137
    %v1148 = vpop.f32.mrf.mxu0
    %v1149 = vadd.f32 %v1110, %v1148
    %v1150 = vpop.f32.mrf.mxu0
    %v1151 = vadd.f32 %v1110, %v1150
    %1152 = vdwg.mxu0
    %v1153 = vadd.f32 %v1149, %v1037
    %v1154 = vadd.f32 %v1151, %v1038
    %s1155 = scalar_lea.vmem %s21, 1
    %v1156 = vld [vmem:[%s1155] sm:$0x1]
    %s1157 = scalar_lea.vmem %s22, 1
    %v1158 = vld [vmem:[%s1157] sm:$0x1]
    %v1159 = vsel %vm206, %v1153, 0.0
    %1160 = vadd.xlane.f32.xlu0 %v1159
    %v1161 = vpop.xlane.xlu0 %1160
    %v1162 = vsel %vm206, %v1154, 0.0
    %1163 = vadd.xlane.f32.xlu0 %v1162
    %v1164 = vpop.xlane.xlu0 %1163
    %v1165 = vmul.f32 %v1161, %v219
    %v1166 = vmul.f32 %v1164, %v219
    %v1167 = vsub.f32 %v1153, %v1165
    %v1168 = vsub.f32 %v1154, %v1166
    %v1169 = vmul.f32 %v1167, %v1167
    %v1170 = vmul.f32 %v1168, %v1168
    %v1171 = vsel %vm206, %v1169, 0.0
    %1172 = vadd.xlane.f32.xlu0 %v1171
    %v1173 = vpop.xlane.xlu0 %1172
    %v1174 = vsel %vm206, %v1170, 0.0
    %1175 = vadd.xlane.f32.xlu0 %v1174
    %v1176 = vpop.xlane.xlu0 %1175
    %v1177 = vmul.f32 %v1173, %v219
    %v1178 = vmul.f32 %v1176, %v219
    %v1179 = vadd.f32 %v1177, 1e-12
    %v1180 = vadd.f32 %v1178, 1e-12
    %v1181 = vrsqrt.pop %v1179
    %v1182 = vmul.f32 %v1181, %v1179
    %v1183 = vmul.f32 %v1182, %v1181
    %v1184 = vmul.f32 0.5, %v1183
    %v1185 = vsub.f32 1.5, %v1184
    %v1186 = vmul.f32 %v1181, %v1185
    %vm1187 = vweird.f32 %v1179
    %vm1188 = vweird.f32 %v1181
    %vm1189 = vmor %vm1187, %vm1188
    %v1190 = vsel %vm1189, %v1181, %v1186
    %v1191 = vrsqrt.pop %v1180
    %v1192 = vmul.f32 %v1191, %v1180
    %v1193 = vmul.f32 %v1192, %v1191
    %v1194 = vmul.f32 0.5, %v1193
    %v1195 = vsub.f32 1.5, %v1194
    %v1196 = vmul.f32 %v1191, %v1195
    %vm1197 = vweird.f32 %v1180
    %vm1198 = vweird.f32 %v1191
    %vm1199 = vmor %vm1197, %vm1198
    %v1200 = vsel %vm1199, %v1191, %v1196
    %v1201 = vmul.f32 %v1167, %v1190
    %v1202 = vmul.f32 %v1168, %v1200
    %v1204 = vperm.slane %v1156, 0
    %v1206 = vmul.f32 %v1201, %v1204
    %v1207 = vmul.f32 %v1202, %v1204
    %v1209 = vperm.slane %v1158, 0
    %v1211 = vadd.f32 %v1206, %v1209
    %v1212 = vadd.f32 %v1207, %v1209
    %1213 = vst.msk [vmem:[#allocation2] sm:$0xff] %vm206, %v1211
    %1214 = vst.msk [vmem:[#allocation2 + $0x8] sm:$0xff] %vm206, %v1212
    // Predicated region
    $region94: #{language_embedding_forward.1} parent=1 // pred_check
      _
    $region95: #{language_embedding_forward.1} parent=1 // pred_check_branch
      %1216 = sbr.rel (0) target = $region97
    $region96: #{language_embedding_forward.1} parent=1 // pred_region
      %1218 = vsyncadd [#allocation3], 0
      %s1219 = sshll.u32 [#allocation2], 4
      %s1220 = int_to_ptr.vmem [resolvable:$true] %s1219
      %s1221 = sshll.u32 %s23, 4
      %s1222 = int_to_ptr.hbm [resolvable:$true] %s1221
      %1227 = dma.vmem_to_hbm [thread:$0]  %s1220, 256, %s1222, [#allocation3], 128, 128, 8
    $region97: #{language_embedding_forward.1} parent=1 // pred_fallthru
      _
    // Predicated region
    $region98: #{language_embedding_forward.1} parent=1 // pred_check
      _
    $region99: #{language_embedding_forward.1} parent=1 // pred_check_branch
      %1229 = sbr.rel (0) target = $region101
    $region100: #{language_embedding_forward.1} parent=1 // pred_region
      %1231 = dma.done [#allocation3], 256
    $region101: #{language_embedding_forward.1} parent=1 // pred_fallthru
      _
    %1232 = vsyncpa [#allocation3], 1

</llo_original>
